<compile_context>
chip_gen: v7x
topology: tpu7x:2x2x1
jax: 0.10.0
libtpu: 0.0.40
codegen_flags: <defaults>
</compile_context>

<pallas_src>
import functools

import jax
import jax.numpy as jnp
from jax import lax
from jax.experimental import pallas as pl
from jax.experimental.pallas import tpu as pltpu


# ----------------------------------------------------------------------------
# Fused kernel: depthwise 3x3 (+bias+ReLU) -> pointwise 1x1 matmul (+bias+ReLU)
# ----------------------------------------------------------------------------
def _fused_block_kernel(x_ref, wdw_ref, b1_ref, wpw_ref, b2_ref, o_ref, pad_ref,
                        *, th, wo, stride, ck, tr8):
    # x_ref:   (1, H, W, Cin)   unpadded image; block index changes only with n, so it
    #                           stays resident in VMEM across the row tiles of one image
    # wdw_ref: (3, 3, Cin)      depthwise weights, BN1 scale folded, depthwise dtype
    # b1_ref:  (1, Cin)         BN1 folded bias, depthwise dtype
    # wpw_ref: (Cin, Cout)      pointwise weights, BN2 scale folded, matmul dtype (bf16)
    # b2_ref:  (1, Cout)        BN2 folded bias, f32
    # o_ref:   (tr8, Cout)      output row tile (th*wo real rows, padded up to tr8)
    # pad_ref: (H+2, W+2, Cin)  VMEM scratch: zero-padded image, depthwise dtype
    s = stride
    _, hh, ww, cin = x_ref.shape
    cout = o_ref.shape[-1]
    t = pl.program_id(1)
    acc_dtype = pad_ref.dtype          # depthwise compute dtype (bf16 on v6e/v7x)

    # ---- once per image: build the (1,1)-zero-padded copy of the input in VMEM ----
    # (replaces the old wrapper-side jnp.pad, which was a full extra HBM pass)
    @pl.when(t == 0)
    def _():
        pad_ref[...] = jnp.zeros_like(pad_ref)
        pad_ref[pl.ds(1, hh), pl.ds(1, ww), :] = x_ref[0].astype(pad_ref.dtype)

    rs = s * (th - 1) + 3              # padded rows touched by this tile's taps
    wspan = s * (wo - 1) + 1           # padded cols spanned by one column tap
    hspan = s * (th - 1) + 1
    row0 = t * (th * s)                # first padded row of this tile

    # Hoisted loads (no per-tap ref reads / casts inside the 9-tap loop).
    w_dw = wdw_ref[...]                # (3, 3, cin)
    b1 = b1_ref[0, :]                  # (cin,)

    m = th * wo
    y = jnp.zeros((m, cout), jnp.float32)

    # ---- channel-chunked depthwise (VPU) + partial pointwise matmul (MXU) ----
    c0 = 0
    while c0 < cin:
        cc = min(ck, cin - c0)
        # Row strip for this tile and channel chunk (already in depthwise dtype).
        strip = pad_ref[pl.ds(row0, rs), :, pl.ds(c0, cc)]        # (rs, W+2, cc)

        acc = jnp.zeros((th, wo, cc), acc_dtype)
        for dwi in range(3):
            col = strip[:, dwi:dwi + wspan:s, :]                  # (rs, wo, cc)
            for dh in range(3):
                taps = col[dh:dh + hspan:s, :, :]                 # (th, wo, cc)
                acc = acc + taps * w_dw[dh, dwi, c0:c0 + cc]
        # BN1 bias + ReLU (scale already folded into w_dw).
        mid = jnp.maximum(acc + b1[c0:c0 + cc], 0).reshape(m, cc)

        # Partial pointwise matmul on the MXU, f32 accumulation.
        y = y + jnp.dot(mid.astype(wpw_ref.dtype), wpw_ref[pl.ds(c0, cc), :],
                        preferred_element_type=jnp.float32)
        c0 += cc

    # BN2 bias + ReLU; pad rows up to the 8-aligned output block if needed.
    y = jnp.maximum(y + b2_ref[0, :], 0.0)
    if tr8 > m:
        y = jnp.concatenate([y, jnp.zeros((tr8 - m, cout), y.dtype)], axis=0)
    o_ref[...] = y.astype(o_ref.dtype)


# ----------------------------------------------------------------------------
# Helpers
# ----------------------------------------------------------------------------
def _fold_bn(gamma, beta, mean, var, eps=1e-5):
    scale = gamma / jnp.sqrt(var + eps)
    bias = beta - mean * scale
    return scale, bias


def _has_native_bf16_vpu():
    """bf16 VALU exists on v6e / v7x; be conservative elsewhere (v5e and older)."""
    try:
        kind = jax.devices()[0].device_kind.lower()
    except Exception:
        return False
    return ("v6" in kind) or ("v7" in kind) or ("7x" in kind)


def _pick_row_tile(ho, wo, target_rows=256):
    """TH divides Ho; prefer (TH*Wo) % 8 == 0 and ~target_rows MXU rows per tile."""
    divs = [d for d in range(1, ho + 1) if ho % d == 0]
    aligned = [d for d in divs if (d * wo) % 8 == 0]
    cands = aligned if aligned else divs      # fallback: kernel pads rows to 8-aligned
    for d in cands:
        if d * wo >= target_rows:
            return d
    return cands[-1]


def _pick_channel_chunk(cin, base):
    """Depthwise/pointwise channel chunk: bounded f32/bf16 accumulator live-set."""
    if cin <= base:
        return cin
    ck = base
    while ck > 1 and cin % ck:
        ck //= 2
    return ck if cin % ck == 0 else cin


# ----------------------------------------------------------------------------
# Full Block forward (PyTorch-facing NCHW interface)
# ----------------------------------------------------------------------------
@functools.partial(jax.jit,
                   static_argnames=("stride", "matmul_dtype", "dw_dtype", "target_rows"))
def block_forward(x_nchw, params, stride=1, matmul_dtype=jnp.bfloat16,
                  dw_dtype=None, target_rows=256):
    """Block.forward: relu(bn2(conv2(relu(bn1(conv1(x)))))).

    conv1: depthwise 3x3, pad 1, groups=ch_in, no bias (stride `stride`)
    conv2: pointwise 1x1, no bias
    BN applied with running statistics (eval mode), folded into weights/bias.
    """
    if dw_dtype is None:
        dw_dtype = jnp.bfloat16 if _has_native_bf16_vpu() else jnp.float32

    x = jnp.transpose(x_nchw, (0, 2, 3, 1))                     # NCHW -> NHWC
    N, H, W, Cin = x.shape
    Cout = params["w_pw"].shape[1]
    s = stride
    Ho = (H - 1) // s + 1
    Wo = (W - 1) // s + 1
    Hp, Wp = H + 2, W + 2

    s1, b1 = _fold_bn(params["bn1_gamma"], params["bn1_beta"],
                      params["bn1_mean"], params["bn1_var"])
    s2, b2 = _fold_bn(params["bn2_gamma"], params["bn2_beta"],
                      params["bn2_mean"], params["bn2_var"])

    # Fold BN scales into the conv weights (exact: conv is linear in w), pre-cast.
    w_dw = (params["w_dw"] * s1[None, None, :]).astype(dw_dtype)
    b1r = b1.reshape(1, Cin).astype(dw_dtype)
    w_pw = (params["w_pw"] * s2[None, :]).astype(matmul_dtype)
    b2r = b2.reshape(1, Cout).astype(jnp.float32)

    TH = _pick_row_tile(Ho, Wo, target_rows)
    n_tiles = Ho // TH
    TR = TH * Wo                                  # real matmul rows per tile
    TR8 = -(-TR // 8) * 8                         # 8-aligned output block rows
    CK = _pick_channel_chunk(Cin, 128 if dw_dtype == jnp.float32 else 256)

    # Explicit scoped-VMEM budget from the double-buffered block footprint.
    esz = lambda dt: jnp.dtype(dt).itemsize
    rs = s * (TH - 1) + 3
    need = (2 * H * W * Cin * esz(x.dtype)                        # input image x2
            + Hp * Wp * Cin * esz(dw_dtype)                       # padded-image scratch
            + 2 * ((9 + 1) * Cin * esz(dw_dtype)
                   + Cin * Cout * esz(matmul_dtype) + Cout * 4)   # weights/bias x2
            + 2 * TR8 * Cout * esz(x.dtype)                       # output tile x2
            + rs * Wp * CK * esz(dw_dtype)                        # strip
            + 3 * TR * CK * esz(dw_dtype)                         # acc / mid / matmul lhs
            + 2 * TR8 * Cout * 4)                                 # f32 accumulator y
    vmem_limit = int(min(64 * 2**20, max(32 * 2**20, 2 * need)))

    kernel = functools.partial(_fused_block_kernel,
                               th=TH, wo=Wo, stride=s, ck=CK, tr8=TR8)

    out2d = pl.pallas_call(
        kernel,
        out_shape=jax.ShapeDtypeStruct((N * n_tiles * TR8, Cout), x.dtype),
        grid_spec=pltpu.PrefetchScalarGridSpec(
            num_scalar_prefetch=0,
            grid=(N, n_tiles),
            in_specs=[
                # Whole (unpadded) image per batch element; block index changes only
                # with n, so Pallas keeps it resident across the row tiles.
                pl.BlockSpec((1, H, W, Cin), lambda n, t: (n, 0, 0, 0)),
                pl.BlockSpec((3, 3, Cin), lambda n, t: (0, 0, 0)),
                pl.BlockSpec((1, Cin), lambda n, t: (0, 0)),
                pl.BlockSpec((Cin, Cout), lambda n, t: (0, 0)),
                pl.BlockSpec((1, Cout), lambda n, t: (0, 0)),
            ],
            out_specs=pl.BlockSpec((TR8, Cout),
                                   lambda n, t: (n * n_tiles + t, 0)),
            # Zero-padded image built in-kernel once per batch element.
            scratch_shapes=[pltpu.VMEM((Hp, Wp, Cin), dw_dtype)],
        ),
        # The padded-image scratch carries state across the row-tile axis, so that
        # axis must stay sequential ("arbitrary"); the batch axis is parallel.
        compiler_params=pltpu.CompilerParams(
            dimension_semantics=("parallel", "arbitrary"),
            vmem_limit_bytes=vmem_limit),
    )(x, w_dw, b1r, w_pw, b2r)

    out = (out2d.reshape(N * n_tiles, TR8, Cout)[:, :TR, :]
           .reshape(N, Ho, Wo, Cout))
    return jnp.transpose(out, (0, 3, 1, 2))                     # NHWC -> NCHW


# ----------------------------------------------------------------------------
# Pure-JAX reference (mirrors the PyTorch module in eval mode, f32)
# ----------------------------------------------------------------------------
def block_reference(x_nchw, params, stride=1, eps=1e-5):
    C_in = params["w_dw"].shape[2]
    w_dw = jnp.transpose(params["w_dw"], (2, 0, 1))[:, None, :, :]   # (C,1,3,3)
    out = lax.conv_general_dilated(
        x_nchw, w_dw, window_strides=(stride, stride), padding=((1, 1), (1, 1)),
        dimension_numbers=("NCHW", "OIHW", "NCHW"),
        feature_group_count=C_in, precision=lax.Precision.HIGHEST)
    s1, b1 = _fold_bn(params["bn1_gamma"], params["bn1_beta"],
                      params["bn1_mean"], params["bn1_var"], eps)
    out = jnp.maximum(out * s1[None, :, None, None] + b1[None, :, None, None], 0.0)

    w_pw = jnp.transpose(params["w_pw"], (1, 0))[:, :, None, None]   # (Cout,Cin,1,1)
    out = lax.conv_general_dilated(
        out, w_pw, window_strides=(1, 1), padding=((0, 0), (0, 0)),
        dimension_numbers=("NCHW", "OIHW", "NCHW"),
        precision=lax.Precision.HIGHEST)
    s2, b2 = _fold_bn(params["bn2_gamma"], params["bn2_beta"],
                      params["bn2_mean"], params["bn2_var"], eps)
    out = jnp.maximum(out * s2[None, :, None, None] + b2[None, :, None, None], 0.0)
    return out


# ----------------------------------------------------------------------------
def make_params(key, ch_in, ch_out):
    ks = jax.random.split(key, 8)
    return {
        # depthwise 3x3 weights, stored (kh, kw, ch_in)
        "w_dw": 0.1 * jax.random.normal(ks[0], (3, 3, ch_in), jnp.float32),
        # pointwise 1x1 weights, stored (ch_in, ch_out)
        "w_pw": 0.1 * jax.random.normal(ks[1], (ch_in, ch_out), jnp.float32),
        "bn1_gamma": 1.0 + 0.1 * jax.random.normal(ks[2], (ch_in,), jnp.float32),
        "bn1_beta": 0.1 * jax.random.normal(ks[3], (ch_in,), jnp.float32),
        "bn1_mean": 0.05 * jax.random.normal(ks[4], (ch_in,), jnp.float32),
        "bn1_var": jnp.abs(1.0 + 0.1 * jax.random.normal(ks[5], (ch_in,), jnp.float32)),
        "bn2_gamma": 1.0 + 0.1 * jax.random.normal(ks[6], (ch_out,), jnp.float32),
        "bn2_beta": 0.1 * jax.random.normal(ks[7], (ch_out,), jnp.float32),
        "bn2_mean": jnp.zeros((ch_out,), jnp.float32),
        "bn2_var": jnp.ones((ch_out,), jnp.float32),
    }
    # TODO(synk): aw_noise_Conv2d's training-time weight noise / channel-index masking
    # (architecture-search machinery) is not modeled; forward math here matches the
    # plain conv+BN inference semantics of the module.


if __name__ == "__main__":
    N, CH_IN, CH_OUT, H, W = 2, 32, 64, 16, 16
    STRIDE = 1

    key = jax.random.PRNGKey(0)
    kx, kp = jax.random.split(key)
    x = jax.random.normal(kx, (N, CH_IN, H, W), jnp.float32)  # NCHW, like PyTorch
    params = make_params(kp, CH_IN, CH_OUT)

    out = block_forward(x, params, stride=STRIDE)
    out = jax.block_until_ready(out)

    ref = block_reference(x, params, stride=STRIDE)
    Ho = (H - 1) // STRIDE + 1
    Wo = (W - 1) // STRIDE + 1
    assert out.shape == (N, CH_OUT, Ho, Wo), out.shape
    # Tolerance deliberately relaxed vs the f32 reference: the pointwise matmul (and,
    # on v6e/v7x, the depthwise tap math) runs in bf16 with f32 accumulation.
    assert jnp.allclose(out, ref, rtol=2e-2, atol=2e-2), (
        float(jnp.max(jnp.abs(out - ref))))

    print("KERNEL_OK")
</pallas_src>

<mosaic_0001>
module attributes {stable_mosaic.version = 11 : i64} {
  func.func @_fused_block_kernel(%arg0: i32, %arg1: i32, %arg2: memref<1x16x16x32xf32, #tpu.memory_space<vmem>>, %arg3: memref<3x3x32xf32, #tpu.memory_space<vmem>>, %arg4: memref<1x32xf32, #tpu.memory_space<vmem>>, %arg5: memref<32x64xbf16, #tpu.memory_space<vmem>>, %arg6: memref<1x64xf32, #tpu.memory_space<vmem>>, %arg7: memref<256x64xf32, #tpu.memory_space<vmem>>, %arg8: memref<18x18x32xf32, #tpu.memory_space<vmem>>) attributes {dimension_semantics = [#tpu.dimension_semantics<parallel>, #tpu.dimension_semantics<arbitrary>], iteration_bounds = array<i64: 2, 1>, scalar_prefetch = 0 : i64, scratch_operands = 1 : i64, tpu.core_type = #tpu.core_type<tc>, window_params = [{transform_indices = @transform_0, window_bounds = array<i64: 1, 16, 16, 32>}, {pipeline_mode = #tpu.pipeline_mode<synchronous>, transform_indices = @transform_1, window_bounds = array<i64: 3, 3, 32>}, {pipeline_mode = #tpu.pipeline_mode<synchronous>, transform_indices = @transform_2, window_bounds = array<i64: 1, 32>}, {pipeline_mode = #tpu.pipeline_mode<synchronous>, transform_indices = @transform_3, window_bounds = array<i64: 32, 64>}, {pipeline_mode = #tpu.pipeline_mode<synchronous>, transform_indices = @transform_4, window_bounds = array<i64: 1, 64>}, {transform_indices = @transform_5, window_bounds = array<i64: 256, 64>}]} {
    %c0_i32 = arith.constant 0 : i32
    %0 = arith.cmpi eq, %arg1, %c0_i32 : i32
    %1 = arith.extui %0 : i1 to i32
    %c0_i32_0 = arith.constant 0 : i32
    %2 = arith.cmpi ne, %1, %c0_i32_0 : i32
    scf.if %2 {
      %cst_17 = arith.constant 0.000000e+00 : f32
      %95 = vector.broadcast %cst_17 : f32 to vector<18x18x32xf32>
      %c0_18 = arith.constant 0 : index
      %c0_19 = arith.constant 0 : index
      %c0_20 = arith.constant 0 : index
      %96 = vector.load %arg8[%c0_18, %c0_19, %c0_20] : memref<18x18x32xf32, #tpu.memory_space<vmem>>, vector<18x18x32xf32>
      tpu.vector_store %arg8[%c0_18, %c0_19, %c0_20], %95 {strides = array<i32>} : memref<18x18x32xf32, #tpu.memory_space<vmem>>, vector<18x18x32xf32>,
      %c0_21 = arith.constant 0 : index
      %c0_22 = arith.constant 0 : index
      %c0_23 = arith.constant 0 : index
      %c0_24 = arith.constant 0 : index
      %97 = vector.load %arg2[%c0_21, %c0_22, %c0_23, %c0_24] : memref<1x16x16x32xf32, #tpu.memory_space<vmem>>, vector<1x16x16x32xf32>
      %98 = vector.shape_cast %97 : vector<1x16x16x32xf32> to vector<16x16x32xf32>
      %c1 = arith.constant 1 : index
      %c1_25 = arith.constant 1 : index
      %c0_26 = arith.constant 0 : index
      %99 = vector.load %arg8[%c1, %c1_25, %c0_26] : memref<18x18x32xf32, #tpu.memory_space<vmem>>, vector<16x16x32xf32>
      tpu.vector_store %arg8[%c1, %c1_25, %c0_26], %98 {strides = array<i32>} : memref<18x18x32xf32, #tpu.memory_space<vmem>>, vector<16x16x32xf32>,
    } else {
    }
    %c16_i32 = arith.constant 16 : i32
    %3 = arith.muli %arg1, %c16_i32 : i32
    %c0 = arith.constant 0 : index
    %c0_1 = arith.constant 0 : index
    %c0_2 = arith.constant 0 : index
    %4 = vector.load %arg3[%c0, %c0_1, %c0_2] : memref<3x3x32xf32, #tpu.memory_space<vmem>>, vector<3x3x32xf32>
    %c0_3 = arith.constant 0 : index
    %c0_4 = arith.constant 0 : index
    %5 = vector.load %arg4[%c0_3, %c0_4] : memref<1x32xf32, #tpu.memory_space<vmem>>, vector<1x32xf32>
    %6 = vector.shape_cast %5 : vector<1x32xf32> to vector<32xf32>
    %cst = arith.constant 0.000000e+00 : f32
    %7 = vector.broadcast %cst : f32 to vector<256x64xf32>
    %8 = arith.index_cast %3 : i32 to index
    %c0_5 = arith.constant 0 : index
    %c0_6 = arith.constant 0 : index
    %9 = vector.load %arg8[%8, %c0_5, %c0_6] : memref<18x18x32xf32, #tpu.memory_space<vmem>>, vector<18x18x32xf32>
    %cst_7 = arith.constant 0.000000e+00 : f32
    %10 = vector.broadcast %cst_7 : f32 to vector<16x16x32xf32>
    %11 = vector.extract_strided_slice %9 {offsets = [0, 0, 0], sizes = [18, 16, 32], strides = [1, 1, 1]} : vector<18x18x32xf32> to vector<18x16x32xf32>
    %12 = vector.extract_strided_slice %11 {offsets = [0, 0, 0], sizes = [16, 16, 32], strides = [1, 1, 1]} : vector<18x16x32xf32> to vector<16x16x32xf32>
    %13 = vector.extract_strided_slice %4 {offsets = [0, 0, 0], sizes = [1, 1, 32], strides = [1, 1, 1]} : vector<3x3x32xf32> to vector<1x1x32xf32>
    %14 = vector.shape_cast %13 : vector<1x1x32xf32> to vector<32xf32>
    %15 = vector.shape_cast %14 : vector<32xf32> to vector<1x1x32xf32>
    %16 = vector.broadcast %15 : vector<1x1x32xf32> to vector<16x16x32xf32>
    %17 = arith.mulf %12, %16 : vector<16x16x32xf32>
    %18 = arith.addf %10, %17 : vector<16x16x32xf32>
    %19 = vector.extract_strided_slice %11 {offsets = [1, 0, 0], sizes = [16, 16, 32], strides = [1, 1, 1]} : vector<18x16x32xf32> to vector<16x16x32xf32>
    %20 = vector.extract_strided_slice %4 {offsets = [1, 0, 0], sizes = [1, 1, 32], strides = [1, 1, 1]} : vector<3x3x32xf32> to vector<1x1x32xf32>
    %21 = vector.shape_cast %20 : vector<1x1x32xf32> to vector<32xf32>
    %22 = vector.shape_cast %21 : vector<32xf32> to vector<1x1x32xf32>
    %23 = vector.broadcast %22 : vector<1x1x32xf32> to vector<16x16x32xf32>
    %24 = arith.mulf %19, %23 : vector<16x16x32xf32>
    %25 = arith.addf %18, %24 : vector<16x16x32xf32>
    %26 = vector.extract_strided_slice %11 {offsets = [2, 0, 0], sizes = [16, 16, 32], strides = [1, 1, 1]} : vector<18x16x32xf32> to vector<16x16x32xf32>
    %27 = vector.extract_strided_slice %4 {offsets = [2, 0, 0], sizes = [1, 1, 32], strides = [1, 1, 1]} : vector<3x3x32xf32> to vector<1x1x32xf32>
    %28 = vector.shape_cast %27 : vector<1x1x32xf32> to vector<32xf32>
    %29 = vector.shape_cast %28 : vector<32xf32> to vector<1x1x32xf32>
    %30 = vector.broadcast %29 : vector<1x1x32xf32> to vector<16x16x32xf32>
    %31 = arith.mulf %26, %30 : vector<16x16x32xf32>
    %32 = arith.addf %25, %31 : vector<16x16x32xf32>
    %33 = vector.extract_strided_slice %9 {offsets = [0, 1, 0], sizes = [18, 16, 32], strides = [1, 1, 1]} : vector<18x18x32xf32> to vector<18x16x32xf32>
    %34 = vector.extract_strided_slice %33 {offsets = [0, 0, 0], sizes = [16, 16, 32], strides = [1, 1, 1]} : vector<18x16x32xf32> to vector<16x16x32xf32>
    %35 = vector.extract_strided_slice %4 {offsets = [0, 1, 0], sizes = [1, 1, 32], strides = [1, 1, 1]} : vector<3x3x32xf32> to vector<1x1x32xf32>
    %36 = vector.shape_cast %35 : vector<1x1x32xf32> to vector<32xf32>
    %37 = vector.shape_cast %36 : vector<32xf32> to vector<1x1x32xf32>
    %38 = vector.broadcast %37 : vector<1x1x32xf32> to vector<16x16x32xf32>
    %39 = arith.mulf %34, %38 : vector<16x16x32xf32>
    %40 = arith.addf %32, %39 : vector<16x16x32xf32>
    %41 = vector.extract_strided_slice %33 {offsets = [1, 0, 0], sizes = [16, 16, 32], strides = [1, 1, 1]} : vector<18x16x32xf32> to vector<16x16x32xf32>
    %42 = vector.extract_strided_slice %4 {offsets = [1, 1, 0], sizes = [1, 1, 32], strides = [1, 1, 1]} : vector<3x3x32xf32> to vector<1x1x32xf32>
    %43 = vector.shape_cast %42 : vector<1x1x32xf32> to vector<32xf32>
    %44 = vector.shape_cast %43 : vector<32xf32> to vector<1x1x32xf32>
    %45 = vector.broadcast %44 : vector<1x1x32xf32> to vector<16x16x32xf32>
    %46 = arith.mulf %41, %45 : vector<16x16x32xf32>
    %47 = arith.addf %40, %46 : vector<16x16x32xf32>
    %48 = vector.extract_strided_slice %33 {offsets = [2, 0, 0], sizes = [16, 16, 32], strides = [1, 1, 1]} : vector<18x16x32xf32> to vector<16x16x32xf32>
    %49 = vector.extract_strided_slice %4 {offsets = [2, 1, 0], sizes = [1, 1, 32], strides = [1, 1, 1]} : vector<3x3x32xf32> to vector<1x1x32xf32>
    %50 = vector.shape_cast %49 : vector<1x1x32xf32> to vector<32xf32>
    %51 = vector.shape_cast %50 : vector<32xf32> to vector<1x1x32xf32>
    %52 = vector.broadcast %51 : vector<1x1x32xf32> to vector<16x16x32xf32>
    %53 = arith.mulf %48, %52 : vector<16x16x32xf32>
    %54 = arith.addf %47, %53 : vector<16x16x32xf32>
    %55 = vector.extract_strided_slice %9 {offsets = [0, 2, 0], sizes = [18, 16, 32], strides = [1, 1, 1]} : vector<18x18x32xf32> to vector<18x16x32xf32>
    %56 = vector.extract_strided_slice %55 {offsets = [0, 0, 0], sizes = [16, 16, 32], strides = [1, 1, 1]} : vector<18x16x32xf32> to vector<16x16x32xf32>
    %57 = vector.extract_strided_slice %4 {offsets = [0, 2, 0], sizes = [1, 1, 32], strides = [1, 1, 1]} : vector<3x3x32xf32> to vector<1x1x32xf32>
    %58 = vector.shape_cast %57 : vector<1x1x32xf32> to vector<32xf32>
    %59 = vector.shape_cast %58 : vector<32xf32> to vector<1x1x32xf32>
    %60 = vector.broadcast %59 : vector<1x1x32xf32> to vector<16x16x32xf32>
    %61 = arith.mulf %56, %60 : vector<16x16x32xf32>
    %62 = arith.addf %54, %61 : vector<16x16x32xf32>
    %63 = vector.extract_strided_slice %55 {offsets = [1, 0, 0], sizes = [16, 16, 32], strides = [1, 1, 1]} : vector<18x16x32xf32> to vector<16x16x32xf32>
    %64 = vector.extract_strided_slice %4 {offsets = [1, 2, 0], sizes = [1, 1, 32], strides = [1, 1, 1]} : vector<3x3x32xf32> to vector<1x1x32xf32>
    %65 = vector.shape_cast %64 : vector<1x1x32xf32> to vector<32xf32>
    %66 = vector.shape_cast %65 : vector<32xf32> to vector<1x1x32xf32>
    %67 = vector.broadcast %66 : vector<1x1x32xf32> to vector<16x16x32xf32>
    %68 = arith.mulf %63, %67 : vector<16x16x32xf32>
    %69 = arith.addf %62, %68 : vector<16x16x32xf32>
    %70 = vector.extract_strided_slice %55 {offsets = [2, 0, 0], sizes = [16, 16, 32], strides = [1, 1, 1]} : vector<18x16x32xf32> to vector<16x16x32xf32>
    %71 = vector.extract_strided_slice %4 {offsets = [2, 2, 0], sizes = [1, 1, 32], strides = [1, 1, 1]} : vector<3x3x32xf32> to vector<1x1x32xf32>
    %72 = vector.shape_cast %71 : vector<1x1x32xf32> to vector<32xf32>
    %73 = vector.shape_cast %72 : vector<32xf32> to vector<1x1x32xf32>
    %74 = vector.broadcast %73 : vector<1x1x32xf32> to vector<16x16x32xf32>
    %75 = arith.mulf %70, %74 : vector<16x16x32xf32>
    %76 = arith.addf %69, %75 : vector<16x16x32xf32>
    %77 = vector.shape_cast %6 : vector<32xf32> to vector<1x1x32xf32>
    %78 = vector.broadcast %77 : vector<1x1x32xf32> to vector<16x16x32xf32>
    %79 = arith.addf %76, %78 : vector<16x16x32xf32>
    %cst_8 = arith.constant 0.000000e+00 : f32
    %80 = vector.broadcast %cst_8 : f32 to vector<16x16x32xf32>
    %81 = arith.maximumf %79, %80 : vector<16x16x32xf32>
    %82 = vector.shape_cast %81 : vector<16x16x32xf32> to vector<256x32xf32>
    %83 = arith.truncf %82 : vector<256x32xf32> to vector<256x32xbf16>
    %c0_9 = arith.constant 0 : index
    %c0_10 = arith.constant 0 : index
    %84 = vector.load %arg5[%c0_9, %c0_10] : memref<32x64xbf16, #tpu.memory_space<vmem>>, vector<32x64xbf16>
    %cst_11 = arith.constant dense<0.000000e+00> : vector<256x64xf32>
    %85 = tpu.matmul %83, %84, %cst_11 {dimension_numbers = #tpu.dot_dimension_numbers<[1], [0], [0], [1], [0, 0, 1, 1], [], []>} : vector<256x32xbf16>, vector<32x64xbf16>, vector<256x64xf32> -> vector<256x64xf32>
    %86 = arith.addf %7, %85 : vector<256x64xf32>
    %c0_12 = arith.constant 0 : index
    %c0_13 = arith.constant 0 : index
    %87 = vector.load %arg6[%c0_12, %c0_13] : memref<1x64xf32, #tpu.memory_space<vmem>>, vector<1x64xf32>
    %88 = vector.shape_cast %87 : vector<1x64xf32> to vector<64xf32>
    %89 = vector.shape_cast %88 : vector<64xf32> to vector<1x64xf32>
    %90 = vector.broadcast %89 : vector<1x64xf32> to vector<256x64xf32>
    %91 = arith.addf %86, %90 : vector<256x64xf32>
    %cst_14 = arith.constant 0.000000e+00 : f32
    %92 = vector.broadcast %cst_14 : f32 to vector<256x64xf32>
    %93 = arith.maximumf %91, %92 : vector<256x64xf32>
    %c0_15 = arith.constant 0 : index
    %c0_16 = arith.constant 0 : index
    %94 = vector.load %arg7[%c0_15, %c0_16] : memref<256x64xf32, #tpu.memory_space<vmem>>, vector<256x64xf32>
    tpu.vector_store %arg7[%c0_15, %c0_16], %93 {strides = array<i32>} : memref<256x64xf32, #tpu.memory_space<vmem>>, vector<256x64xf32>,
    return
  }
  func.func @transform_0(%arg0: i32, %arg1: i32) -> (i32, i32, i32, i32) {
    %c0_i32 = arith.constant 0 : i32
    %c0_i32_0 = arith.constant 0 : i32
    %c0_i32_1 = arith.constant 0 : i32
    %c0_i32_2 = arith.constant 0 : i32
    return %arg0, %c0_i32, %c0_i32_0, %c0_i32_1 : i32, i32, i32, i32
  }
  func.func @transform_1(%arg0: i32, %arg1: i32) -> (i32, i32, i32) {
    %c0_i32 = arith.constant 0 : i32
    %c0_i32_0 = arith.constant 0 : i32
    %c0_i32_1 = arith.constant 0 : i32
    %c0_i32_2 = arith.constant 0 : i32
    return %c0_i32, %c0_i32_0, %c0_i32_1 : i32, i32, i32
  }
  func.func @transform_2(%arg0: i32, %arg1: i32) -> (i32, i32) {
    %c0_i32 = arith.constant 0 : i32
    %c0_i32_0 = arith.constant 0 : i32
    %c0_i32_1 = arith.constant 0 : i32
    return %c0_i32, %c0_i32_0 : i32, i32
  }
  func.func @transform_3(%arg0: i32, %arg1: i32) -> (i32, i32) {
    %c0_i32 = arith.constant 0 : i32
    %c0_i32_0 = arith.constant 0 : i32
    %c0_i32_1 = arith.constant 0 : i32
    return %c0_i32, %c0_i32_0 : i32, i32
  }
  func.func @transform_4(%arg0: i32, %arg1: i32) -> (i32, i32) {
    %c0_i32 = arith.constant 0 : i32
    %c0_i32_0 = arith.constant 0 : i32
    %c0_i32_1 = arith.constant 0 : i32
    return %c0_i32, %c0_i32_0 : i32, i32
  }
  func.func @transform_5(%arg0: i32, %arg1: i32) -> (i32, i32) {
    %c1_i32 = arith.constant 1 : i32
    %0 = arith.muli %arg0, %c1_i32 : i32
    %1 = arith.addi %0, %arg1 : i32
    %c0_i32 = arith.constant 0 : i32
    %c0_i32_0 = arith.constant 0 : i32
    return %1, %c0_i32 : i32, i32
  }
}

</mosaic_0001>

<llo_original>
// kernel: block_forward.1
$region0: #{block_forward.1}
  #allocation0 [shape = 'u32[]', space=smem, size = 0x4, offset = 0x4, fixed_abs, tag = 'smem constant byte address 0x4 - core index']
  #allocation1 [shape = 'u32[144,128]{1,0:T(1,128)}', space=vmem, size = 0x12000, scoped, tag = 'internal scratch']
  #allocation2 [shape = 'f32[18,18,32]{2,1,0:T(8,128)}', space=vmem, size = 0x36000, scoped, tag = 'scratch operand']
  %s0 = inlined_call_operand.hbm [shape: f32[2,16,16,32], index: 0, kind: input, shape index: {}]
  %s1 = inlined_call_operand.vmem [shape: f32[3,3,32], index: 1, kind: input, shape index: {}]
  %s2 = inlined_call_operand.vmem [shape: f32[1,32], index: 2, kind: input, shape index: {}]
  %s3 = inlined_call_operand.vmem [shape: bf16[32,64], index: 3, kind: input, shape index: {}]
  %s4 = inlined_call_operand.vmem [shape: f32[1,64], index: 4, kind: input, shape index: {}]
  %s5 = inlined_call_operand.hbm [shape: f32[512,64], index: 5, kind: output, shape index: {}]
  %s6 = sld [smem:[#allocation0]]
  $region61: #{block_forward.1} parent=0
    _
  %s8 = ssub.s32 1, %s6
  %s9 = scalar_select 0, %s8, %s6
  $region1: #{block_forward.1} parent=0
    #allocation3 [shape = 'u8[262144]{0}', space=vmem, size = 0x40000, scoped, tag = 'input window, operand 0']
    #allocation4 [shape = 's32[2]{0}', space=sflag, size = 0x8, scoped, tag = 'scoped memory for block_forward.1']
    #allocation5 [shape = 's32[2]{0}', space=sflag, size = 0x8, scoped, tag = 'scoped memory for block_forward.1']
    #allocation6 [shape = 'u8[262144]{0}', space=vmem, size = 0x40000, scoped, tag = 'output window, operand 0']
    %10 = vsyncpa [#allocation4], 0
    %s11 = scalar_lea.sflag [#allocation4], 1
    %12 = vsyncpa %s11, 0
    %13 = vsyncpa [#allocation5], 0
    %s14 = scalar_lea.sflag [#allocation5], 1
    %15 = vsyncpa %s14, 0
    loop: start=0, step=1, limit=4
    $region2: #{block_forward.1} parent=1 // loop_pre_header
      _
    $region3: #{block_forward.1} parent=1 // loop_header
      %s17 = sphi 0, %s21
      %p18 = scmp.ge.s32.totalorder %s17, 4
      %s24 = sphi 0, %s36
      %s25 = sphi 0, %s32
      %s26 = sphi 0, %s24
      %s27 = sphi 0, %s25
      %s28 = sphi 0, %s26
      %s29 = sphi 0, %s27
      %s39 = sphi 0, %s41
      %s42 = sphi 0, %s39
      %s43 = sphi 0, %s42
      %s59 = sphi 0, %s43
      %s63 = sphi 0, %s63
      %s65 = sphi 0, %s63
      %s66 = sphi 0, %s65
      %s80 = sphi 0, %s66
      %s84 = sphi 0, %s84
      %s86 = sphi 0, %s84
      %s87 = sphi 0, %s86
      %s101 = sphi 0, %s87
      %s105 = sphi 0, %s105
      %s107 = sphi 0, %s105
      %s108 = sphi 0, %s107
      %s122 = sphi 0, %s108
      %s126 = sphi 0, %s126
      %s128 = sphi 0, %s126
      %s129 = sphi 0, %s128
      %s143 = sphi 0, %s129
      %s151 = sphi 0, %s153
      %s154 = sphi 0, %s151
      %s155 = sphi 0, %s154
      %s171 = sphi 0, %s155
    $region4: #{block_forward.1} parent=1 // loop_header_branch
      %20 = sbr.rel (%p18) target = $region8
    $region5: #{block_forward.1} parent=1 // loop_body
      %s22 = ssub.s32 %s17, 1
      %s23 = ssub.s32 %s17, 2
      %s30 = sadd.s32 1, %s25
      %p31 = scmp.ge.s32.totalorder %s30, 1
      %s32 = scalar_select %p31, 0, %s30
      %s33 = sadd.s32 1, %s24
      %s34 = scalar_select %p31, %s33, %s24
      %p35 = scmp.ge.s32.totalorder %s34, 2
      %s36 = scalar_select %p35, 0, %s34
      %s37 = ssub.s32 %s24, %s36
      %p38 = scmp.eq.s32.totalorder %s37, 0
      %s40 = sadd.s32 %s39, 1
      %s41 = scalar_select %p38, %s39, %s40
      %p44 = pneg %p38
      %p45 = scmp.eq.s32.totalorder %s17, 1
      %p46 = por %p44, %p45
      %p47 = scmp.ne.s32.totalorder %s39, %s42
      %p48 = scmp.eq.s32.totalorder %s17, 0
      %p49 = por %p47, %p48
      %p50 = scmp.ne.s32.totalorder %s39, %s42
      %p51 = scmp.eq.s32.totalorder %s22, 1
      %p52 = por %p50, %p51
      %p53 = scmp.ne.s32.totalorder %s42, %s43
      %p54 = scmp.eq.s32.totalorder %s22, 0
      %p55 = por %p53, %p54
      %p56 = scmp.ne.s32.totalorder %s42, %s43
      %p57 = scmp.eq.s32.totalorder %s23, 1
      %p58 = por %p56, %p57
      %p60 = scmp.ne.s32.totalorder %s43, %s59
      %p61 = scmp.eq.s32.totalorder %s23, 0
      %p62 = por %p60, %p61
      %s64 = sadd.s32 %s63, 1
      %p67 = scmp.eq.s32.totalorder %s17, 1
      %p68 = scmp.ne.s32.totalorder %s63, %s65
      %p69 = scmp.eq.s32.totalorder %s17, 0
      %p70 = por %p68, %p69
      %p71 = scmp.ne.s32.totalorder %s63, %s65
      %p72 = scmp.eq.s32.totalorder %s22, 1
      %p73 = por %p71, %p72
      %p74 = scmp.ne.s32.totalorder %s65, %s66
      %p75 = scmp.eq.s32.totalorder %s22, 0
      %p76 = por %p74, %p75
      %p77 = scmp.ne.s32.totalorder %s65, %s66
      %p78 = scmp.eq.s32.totalorder %s23, 1
      %p79 = por %p77, %p78
      %p81 = scmp.ne.s32.totalorder %s66, %s80
      %p82 = scmp.eq.s32.totalorder %s23, 0
      %p83 = por %p81, %p82
      %s85 = sadd.s32 %s84, 1
      %p88 = scmp.eq.s32.totalorder %s17, 1
      %p89 = scmp.ne.s32.totalorder %s84, %s86
      %p90 = scmp.eq.s32.totalorder %s17, 0
      %p91 = por %p89, %p90
      %p92 = scmp.ne.s32.totalorder %s84, %s86
      %p93 = scmp.eq.s32.totalorder %s22, 1
      %p94 = por %p92, %p93
      %p95 = scmp.ne.s32.totalorder %s86, %s87
      %p96 = scmp.eq.s32.totalorder %s22, 0
      %p97 = por %p95, %p96
      %p98 = scmp.ne.s32.totalorder %s86, %s87
      %p99 = scmp.eq.s32.totalorder %s23, 1
      %p100 = por %p98, %p99
      %p102 = scmp.ne.s32.totalorder %s87, %s101
      %p103 = scmp.eq.s32.totalorder %s23, 0
      %p104 = por %p102, %p103
      %s106 = sadd.s32 %s105, 1
      %p109 = scmp.eq.s32.totalorder %s17, 1
      %p110 = scmp.ne.s32.totalorder %s105, %s107
      %p111 = scmp.eq.s32.totalorder %s17, 0
      %p112 = por %p110, %p111
      %p113 = scmp.ne.s32.totalorder %s105, %s107
      %p114 = scmp.eq.s32.totalorder %s22, 1
      %p115 = por %p113, %p114
      %p116 = scmp.ne.s32.totalorder %s107, %s108
      %p117 = scmp.eq.s32.totalorder %s22, 0
      %p118 = por %p116, %p117
      %p119 = scmp.ne.s32.totalorder %s107, %s108
      %p120 = scmp.eq.s32.totalorder %s23, 1
      %p121 = por %p119, %p120
      %p123 = scmp.ne.s32.totalorder %s108, %s122
      %p124 = scmp.eq.s32.totalorder %s23, 0
      %p125 = por %p123, %p124
      %s127 = sadd.s32 %s126, 1
      %p130 = scmp.eq.s32.totalorder %s17, 1
      %p131 = scmp.ne.s32.totalorder %s126, %s128
      %p132 = scmp.eq.s32.totalorder %s17, 0
      %p133 = por %p131, %p132
      %p134 = scmp.ne.s32.totalorder %s126, %s128
      %p135 = scmp.eq.s32.totalorder %s22, 1
      %p136 = por %p134, %p135
      %p137 = scmp.ne.s32.totalorder %s128, %s129
      %p138 = scmp.eq.s32.totalorder %s22, 0
      %p139 = por %p137, %p138
      %p140 = scmp.ne.s32.totalorder %s128, %s129
      %p141 = scmp.eq.s32.totalorder %s23, 1
      %p142 = por %p140, %p141
      %p144 = scmp.ne.s32.totalorder %s129, %s143
      %p145 = scmp.eq.s32.totalorder %s23, 0
      %p146 = por %p144, %p145
      %s147 = sadd.s32 %s24, %s25
      %s148 = sadd.s32 %s36, %s32
      %s149 = ssub.s32 %s147, %s148
      %p150 = scmp.eq.s32.totalorder %s149, 0
      %s152 = sadd.s32 %s151, 1
      %s153 = scalar_select %p150, %s151, %s152
      %p156 = pneg %p150
      %p157 = scmp.eq.s32.totalorder %s17, 1
      %p158 = por %p156, %p157
      %p159 = scmp.ne.s32.totalorder %s151, %s154
      %p160 = scmp.eq.s32.totalorder %s17, 0
      %p161 = por %p159, %p160
      %p162 = scmp.ne.s32.totalorder %s151, %s154
      %p163 = scmp.eq.s32.totalorder %s22, 1
      %p164 = por %p162, %p163
      %p165 = scmp.ne.s32.totalorder %s154, %s155
      %p166 = scmp.eq.s32.totalorder %s22, 0
      %p167 = por %p165, %p166
      %p168 = scmp.ne.s32.totalorder %s154, %s155
      %p169 = scmp.eq.s32.totalorder %s23, 1
      %p170 = por %p168, %p169
      %p172 = scmp.ne.s32.totalorder %s155, %s171
      %p173 = scmp.eq.s32.totalorder %s23, 0
      %p174 = por %p172, %p173
      %p175 = scmp.le.s32.totalorder 1, %s17
      %p176 = scmp.lt.s32.totalorder %s17, 3
      %p177 = pnand %p175, %p176
      %p178 = pneg %p177
      // Predicated region
      $region9: #{block_forward.1} parent=5 // pred_check
        _
      $region10: #{block_forward.1} parent=5 // pred_check_branch
        %180 = sbr.rel (%p177) target = $region12
      $region11: #{block_forward.1} parent=5 // pred_region
        %s181 = ssub.s32 %s17, 1
        // Predicated region
        $region13: #{block_forward.1} parent=11 // pred_check
          %p182 = pneg %p76
        $region14: #{block_forward.1} parent=11 // pred_check_branch
          %184 = sbr.rel (%p182) target = $region16
        $region15: #{block_forward.1} parent=11 // pred_region
          _
        $region16: #{block_forward.1} parent=11 // pred_fallthru
          _
        // Predicated region
        $region17: #{block_forward.1} parent=11 // pred_check
          %p185 = pneg %p97
        $region18: #{block_forward.1} parent=11 // pred_check_branch
          %187 = sbr.rel (%p185) target = $region20
        $region19: #{block_forward.1} parent=11 // pred_region
          _
        $region20: #{block_forward.1} parent=11 // pred_fallthru
          _
        // Predicated region
        $region21: #{block_forward.1} parent=11 // pred_check
          %p188 = pneg %p118
        $region22: #{block_forward.1} parent=11 // pred_check_branch
          %190 = sbr.rel (%p188) target = $region24
        $region23: #{block_forward.1} parent=11 // pred_region
          _
        $region24: #{block_forward.1} parent=11 // pred_fallthru
          _
        // Predicated region
        $region25: #{block_forward.1} parent=11 // pred_check
          %p191 = pneg %p139
        $region26: #{block_forward.1} parent=11 // pred_check_branch
          %193 = sbr.rel (%p191) target = $region28
        $region27: #{block_forward.1} parent=11 // pred_region
          _
        $region28: #{block_forward.1} parent=11 // pred_fallthru
          _
      $region12: #{block_forward.1} parent=5 // pred_fallthru
        _
      %p194 = scmp.lt.s32.totalorder %s17, 2
      // Predicated region
      $region29: #{block_forward.1} parent=5 // pred_check
        %p195 = pneg %p194
      $region30: #{block_forward.1} parent=5 // pred_check_branch
        %197 = sbr.rel (%p195) target = $region32
      $region31: #{block_forward.1} parent=5 // pred_region
        // Predicated region
        $region33: #{block_forward.1} parent=31 // pred_check
          %p198 = pneg %p49
        $region34: #{block_forward.1} parent=31 // pred_check_branch
          %200 = sbr.rel (%p198) target = $region36
        $region35: #{block_forward.1} parent=31 // pred_region
          %s201 = sand.u32 %s39, 1
          %s202 = scalar_lea.sflag [#allocation4], %s201
          %s203 = sand.u32 %s39, 1
          %s204 = smul.addr %s203, 256
          %s205 = scalar_lea.vmem [#allocation3], %s204
          %s207 = ssub.s32 4096, 4096
          %208 = vsyncadd %s202, %s207
          %s209 = smul.addr %s24, 32
          %s210 = smul.addr %s209, 128
          %s211 = scalar_lea.hbm %s0, %s210
          %s212 = sshll.u32 %s205, 4
          %s213 = int_to_ptr.vmem [resolvable:$true] %s212
          %218 = dma.hbm_to_vmem [thread:$0]  %s211, 4096, %s213, %s202, 128, 128, 8
        $region36: #{block_forward.1} parent=31 // pred_fallthru
          _
      $region32: #{block_forward.1} parent=5 // pred_fallthru
        _
      %p219 = scmp.le.s32.totalorder 1, %s17
      %p220 = scmp.lt.s32.totalorder %s17, 3
      %p221 = pnand %p219, %p220
      %p222 = pneg %p221
      // Predicated region
      $region37: #{block_forward.1} parent=5 // pred_check
        _
      $region38: #{block_forward.1} parent=5 // pred_check_branch
        %224 = sbr.rel (%p221) target = $region40
      $region39: #{block_forward.1} parent=5 // pred_region
        %s225 = ssub.s32 %s17, 1
        %s226 = sand.u32 %s42, 1
        %s227 = scalar_lea.sflag [#allocation4], %s226
        %s228 = sand.u32 %s42, 1
        %s229 = smul.addr %s228, 256
        %s230 = scalar_lea.vmem [#allocation3], %s229
        // Predicated region
        $region41: #{block_forward.1} parent=39 // pred_check
          %p231 = pneg %p55
        $region42: #{block_forward.1} parent=39 // pred_check_branch
          %233 = sbr.rel (%p231) target = $region44
        $region43: #{block_forward.1} parent=39 // pred_region
          %234 = dma.done %s227, 4096
        $region44: #{block_forward.1} parent=39 // pred_fallthru
          _
        %s235 = sand.u32 %s42, 1
        %s236 = scalar_lea.sflag [#allocation4], %s235
        %s237 = sand.u32 %s42, 1
        %s238 = smul.addr %s237, 256
        %s239 = scalar_lea.vmem [#allocation3], %s238
        %p240 = pneg %p55
        %p241 = pneg %p52
        %p242 = pneg %p76
        %p243 = pneg %p73
        %p244 = pneg %p97
        %p245 = pneg %p94
        %p246 = pneg %p118
        %p247 = pneg %p115
        %p248 = pneg %p139
        %p249 = pneg %p136
        %p250 = pneg %p167
        %p251 = pneg %p164
        %s252 = sand.u32 %s154, 1
        %s253 = scalar_lea.sflag [#allocation5], %s252
        %s254 = sand.u32 %s154, 1
        %s255 = smul.addr %s254, 256
        %s256 = scalar_lea.vmem [#allocation6], %s255
        %s257 = sadd.s32 %s26, %s27
        %s258 = smul.u32 32, %s257
        %p260 = scmp.eq.s32.totalorder %s27, 0
        // Predicated region
        $region45: #{block_forward.1} parent=39 // pred_check
          %p261 = pneg %p260
        $region46: #{block_forward.1} parent=39 // pred_check_branch
          %263 = sbr.rel (%p261) target = $region48
        $region47: #{block_forward.1} parent=39 // pred_region
          %vm264 = vcmask 261120
          %265 = vst.msk [vmem:[#allocation2] sm:$0xff] %vm264, 0.0
          %266 = vst.msk [vmem:[#allocation2 + $0x8] sm:$0xff] %vm264, 0.0
          %vm267 = vcmask 254976
          %268 = vst.msk [vmem:[#allocation2 + $0x10] sm:$0x3] %vm267, 0.0
          %269 = vst.msk [vmem:[#allocation2 + $0x18] sm:$0xff] %vm264, 0.0
          %270 = vst.msk [vmem:[#allocation2 + $0x20] sm:$0xff] %vm264, 0.0
          %271 = vst.msk [vmem:[#allocation2 + $0x28] sm:$0x3] %vm267, 0.0
          %272 = vst.msk [vmem:[#allocation2 + $0x30] sm:$0xff] %vm264, 0.0
          %273 = vst.msk [vmem:[#allocation2 + $0x38] sm:$0xff] %vm264, 0.0
          %274 = vst.msk [vmem:[#allocation2 + $0x40] sm:$0x3] %vm267, 0.0
          %275 = vst.msk [vmem:[#allocation2 + $0x48] sm:$0xff] %vm264, 0.0
          %276 = vst.msk [vmem:[#allocation2 + $0x50] sm:$0xff] %vm264, 0.0
          %277 = vst.msk [vmem:[#allocation2 + $0x58] sm:$0x3] %vm267, 0.0
          %278 = vst.msk [vmem:[#allocation2 + $0x60] sm:$0xff] %vm264, 0.0
          %279 = vst.msk [vmem:[#allocation2 + $0x68] sm:$0xff] %vm264, 0.0
          %280 = vst.msk [vmem:[#allocation2 + $0x70] sm:$0x3] %vm267, 0.0
          %281 = vst.msk [vmem:[#allocation2 + $0x78] sm:$0xff] %vm264, 0.0
          %282 = vst.msk [vmem:[#allocation2 + $0x80] sm:$0xff] %vm264, 0.0
          %283 = vst.msk [vmem:[#allocation2 + $0x88] sm:$0x3] %vm267, 0.0
          %284 = vst.msk [vmem:[#allocation2 + $0x90] sm:$0xff] %vm264, 0.0
          %285 = vst.msk [vmem:[#allocation2 + $0x98] sm:$0xff] %vm264, 0.0
          %286 = vst.msk [vmem:[#allocation2 + $0xa0] sm:$0x3] %vm267, 0.0
          %287 = vst.msk [vmem:[#allocation2 + $0xa8] sm:$0xff] %vm264, 0.0
          %288 = vst.msk [vmem:[#allocation2 + $0xb0] sm:$0xff] %vm264, 0.0
          %289 = vst.msk [vmem:[#allocation2 + $0xb8] sm:$0x3] %vm267, 0.0
          %290 = vst.msk [vmem:[#allocation2 + $0xc0] sm:$0xff] %vm264, 0.0
          %291 = vst.msk [vmem:[#allocation2 + $0xc8] sm:$0xff] %vm264, 0.0
          %292 = vst.msk [vmem:[#allocation2 + $0xd0] sm:$0x3] %vm267, 0.0
          %293 = vst.msk [vmem:[#allocation2 + $0xd8] sm:$0xff] %vm264, 0.0
          %294 = vst.msk [vmem:[#allocation2 + $0xe0] sm:$0xff] %vm264, 0.0
          %295 = vst.msk [vmem:[#allocation2 + $0xe8] sm:$0x3] %vm267, 0.0
          %296 = vst.msk [vmem:[#allocation2 + $0xf0] sm:$0xff] %vm264, 0.0
          %297 = vst.msk [vmem:[#allocation2 + $0xf8] sm:$0xff] %vm264, 0.0
          %298 = vst.msk [vmem:[#allocation2 + $0x100] sm:$0x3] %vm267, 0.0
          %299 = vst.msk [vmem:[#allocation2 + $0x108] sm:$0xff] %vm264, 0.0
          %300 = vst.msk [vmem:[#allocation2 + $0x110] sm:$0xff] %vm264, 0.0
          %301 = vst.msk [vmem:[#allocation2 + $0x118] sm:$0x3] %vm267, 0.0
          %302 = vst.msk [vmem:[#allocation2 + $0x120] sm:$0xff] %vm264, 0.0
          %303 = vst.msk [vmem:[#allocation2 + $0x128] sm:$0xff] %vm264, 0.0
          %304 = vst.msk [vmem:[#allocation2 + $0x130] sm:$0x3] %vm267, 0.0
          %305 = vst.msk [vmem:[#allocation2 + $0x138] sm:$0xff] %vm264, 0.0
          %306 = vst.msk [vmem:[#allocation2 + $0x140] sm:$0xff] %vm264, 0.0
          %307 = vst.msk [vmem:[#allocation2 + $0x148] sm:$0x3] %vm267, 0.0
          %308 = vst.msk [vmem:[#allocation2 + $0x150] sm:$0xff] %vm264, 0.0
          %309 = vst.msk [vmem:[#allocation2 + $0x158] sm:$0xff] %vm264, 0.0
          %310 = vst.msk [vmem:[#allocation2 + $0x160] sm:$0x3] %vm267, 0.0
          %311 = vst.msk [vmem:[#allocation2 + $0x168] sm:$0xff] %vm264, 0.0
          %312 = vst.msk [vmem:[#allocation2 + $0x170] sm:$0xff] %vm264, 0.0
          %313 = vst.msk [vmem:[#allocation2 + $0x178] sm:$0x3] %vm267, 0.0
          %314 = vst.msk [vmem:[#allocation2 + $0x180] sm:$0xff] %vm264, 0.0
          %315 = vst.msk [vmem:[#allocation2 + $0x188] sm:$0xff] %vm264, 0.0
          %316 = vst.msk [vmem:[#allocation2 + $0x190] sm:$0x3] %vm267, 0.0
          %317 = vst.msk [vmem:[#allocation2 + $0x198] sm:$0xff] %vm264, 0.0
          %318 = vst.msk [vmem:[#allocation2 + $0x1a0] sm:$0xff] %vm264, 0.0
          %319 = vst.msk [vmem:[#allocation2 + $0x1a8] sm:$0x3] %vm267, 0.0
          %v320 = vld [vmem:[%s230] sm:$0xff]
          %v321 = vld [vmem:[%s230 + $0x8] sm:$0xff]
          %v322 = vld [vmem:[%s230 + $0x10] sm:$0xff]
          %v323 = vld [vmem:[%s230 + $0x18] sm:$0xff]
          %v324 = vld [vmem:[%s230 + $0x20] sm:$0xff]
          %v325 = vld [vmem:[%s230 + $0x28] sm:$0xff]
          %v326 = vld [vmem:[%s230 + $0x30] sm:$0xff]
          %v327 = vld [vmem:[%s230 + $0x38] sm:$0xff]
          %v328 = vld [vmem:[%s230 + $0x40] sm:$0xff]
          %v329 = vld [vmem:[%s230 + $0x48] sm:$0xff]
          %v330 = vld [vmem:[%s230 + $0x50] sm:$0xff]
          %v331 = vld [vmem:[%s230 + $0x58] sm:$0xff]
          %v332 = vld [vmem:[%s230 + $0x60] sm:$0xff]
          %v333 = vld [vmem:[%s230 + $0x68] sm:$0xff]
          %v334 = vld [vmem:[%s230 + $0x70] sm:$0xff]
          %v335 = vld [vmem:[%s230 + $0x78] sm:$0xff]
          %v336 = vld [vmem:[%s230 + $0x80] sm:$0xff]
          %v337 = vld [vmem:[%s230 + $0x88] sm:$0xff]
          %v338 = vld [vmem:[%s230 + $0x90] sm:$0xff]
          %v339 = vld [vmem:[%s230 + $0x98] sm:$0xff]
          %v340 = vld [vmem:[%s230 + $0xa0] sm:$0xff]
          %v341 = vld [vmem:[%s230 + $0xa8] sm:$0xff]
          %v342 = vld [vmem:[%s230 + $0xb0] sm:$0xff]
          %v343 = vld [vmem:[%s230 + $0xb8] sm:$0xff]
          %v344 = vld [vmem:[%s230 + $0xc0] sm:$0xff]
          %v345 = vld [vmem:[%s230 + $0xc8] sm:$0xff]
          %v346 = vld [vmem:[%s230 + $0xd0] sm:$0xff]
          %v347 = vld [vmem:[%s230 + $0xd8] sm:$0xff]
          %v348 = vld [vmem:[%s230 + $0xe0] sm:$0xff]
          %v349 = vld [vmem:[%s230 + $0xe8] sm:$0xff]
          %v350 = vld [vmem:[%s230 + $0xf0] sm:$0xff]
          %v351 = vld [vmem:[%s230 + $0xf8] sm:$0xff]
          %s352 = scalar_lea.vmem [#allocation2], 24
          %353 = vst.msk [vmem:[%s352 + $0x1] sm:$0xff] %vm264, %v320
          %354 = vst.msk [vmem:[%s352 + $0x9] sm:$0xff] %vm264, %v321
          %355 = vst.msk [vmem:[%s352 + $0x19] sm:$0xff] %vm264, %v322
          %356 = vst.msk [vmem:[%s352 + $0x21] sm:$0xff] %vm264, %v323
          %357 = vst.msk [vmem:[%s352 + $0x31] sm:$0xff] %vm264, %v324
          %358 = vst.msk [vmem:[%s352 + $0x39] sm:$0xff] %vm264, %v325
          %359 = vst.msk [vmem:[%s352 + $0x49] sm:$0xff] %vm264, %v326
          %360 = vst.msk [vmem:[%s352 + $0x51] sm:$0xff] %vm264, %v327
          %361 = vst.msk [vmem:[%s352 + $0x61] sm:$0xff] %vm264, %v328
          %362 = vst.msk [vmem:[%s352 + $0x69] sm:$0xff] %vm264, %v329
          %363 = vst.msk [vmem:[%s352 + $0x79] sm:$0xff] %vm264, %v330
          %364 = vst.msk [vmem:[%s352 + $0x81] sm:$0xff] %vm264, %v331
          %365 = vst.msk [vmem:[%s352 + $0x91] sm:$0xff] %vm264, %v332
          %366 = vst.msk [vmem:[%s352 + $0x99] sm:$0xff] %vm264, %v333
          %367 = vst.msk [vmem:[%s352 + $0xa9] sm:$0xff] %vm264, %v334
          %368 = vst.msk [vmem:[%s352 + $0xb1] sm:$0xff] %vm264, %v335
          %369 = vst.msk [vmem:[%s352 + $0xc1] sm:$0xff] %vm264, %v336
          %370 = vst.msk [vmem:[%s352 + $0xc9] sm:$0xff] %vm264, %v337
          %371 = vst.msk [vmem:[%s352 + $0xd9] sm:$0xff] %vm264, %v338
          %372 = vst.msk [vmem:[%s352 + $0xe1] sm:$0xff] %vm264, %v339
          %373 = vst.msk [vmem:[%s352 + $0xf1] sm:$0xff] %vm264, %v340
          %374 = vst.msk [vmem:[%s352 + $0xf9] sm:$0xff] %vm264, %v341
          %375 = vst.msk [vmem:[%s352 + $0x109] sm:$0xff] %vm264, %v342
          %376 = vst.msk [vmem:[%s352 + $0x111] sm:$0xff] %vm264, %v343
          %377 = vst.msk [vmem:[%s352 + $0x121] sm:$0xff] %vm264, %v344
          %378 = vst.msk [vmem:[%s352 + $0x129] sm:$0xff] %vm264, %v345
          %379 = vst.msk [vmem:[%s352 + $0x139] sm:$0xff] %vm264, %v346
          %380 = vst.msk [vmem:[%s352 + $0x141] sm:$0xff] %vm264, %v347
          %381 = vst.msk [vmem:[%s352 + $0x151] sm:$0xff] %vm264, %v348
          %382 = vst.msk [vmem:[%s352 + $0x159] sm:$0xff] %vm264, %v349
          %383 = vst.msk [vmem:[%s352 + $0x169] sm:$0xff] %vm264, %v350
          %384 = vst.msk [vmem:[%s352 + $0x171] sm:$0xff] %vm264, %v351
        $region48: #{block_forward.1} parent=39 // pred_fallthru
          _
        %s385 = smul.u32 %s27, 16
        %v386 = vld [vmem:[%s1] sm:$0x7]
        %v387 = vld [vmem:[%s1 + $0x4] sm:$0x7]
        %v388 = vld [vmem:[%s1 + $0x8] sm:$0x7]
        %v389 = vld [vmem:[%s2] sm:$0x1]
        %s390 = smul.u32 %s385, 24
        %s391 = scalar_lea.vmem [#allocation2], %s390
        %v392 = vld [vmem:[%s391] sm:$0xff]
        %v393 = vld [vmem:[%s391 + $0x8] sm:$0xff]
        %v394 = vld [vmem:[%s391 + $0x10] sm:$0x3]
        %v395 = vld [vmem:[%s391 + $0x18] sm:$0xff]
        %v396 = vld [vmem:[%s391 + $0x20] sm:$0xff]
        %v397 = vld [vmem:[%s391 + $0x28] sm:$0x3]
        %v398 = vld [vmem:[%s391 + $0x30] sm:$0xff]
        %v399 = vld [vmem:[%s391 + $0x38] sm:$0xff]
        %v400 = vld [vmem:[%s391 + $0x40] sm:$0x3]
        %v401 = vld [vmem:[%s391 + $0x48] sm:$0xff]
        %v402 = vld [vmem:[%s391 + $0x50] sm:$0xff]
        %v403 = vld [vmem:[%s391 + $0x58] sm:$0x3]
        %v404 = vld [vmem:[%s391 + $0x60] sm:$0xff]
        %v405 = vld [vmem:[%s391 + $0x68] sm:$0xff]
        %v406 = vld [vmem:[%s391 + $0x70] sm:$0x3]
        %v407 = vld [vmem:[%s391 + $0x78] sm:$0xff]
        %v408 = vld [vmem:[%s391 + $0x80] sm:$0xff]
        %v409 = vld [vmem:[%s391 + $0x88] sm:$0x3]
        %v410 = vld [vmem:[%s391 + $0x90] sm:$0xff]
        %v411 = vld [vmem:[%s391 + $0x98] sm:$0xff]
        %v412 = vld [vmem:[%s391 + $0xa0] sm:$0x3]
        %v413 = vld [vmem:[%s391 + $0xa8] sm:$0xff]
        %v414 = vld [vmem:[%s391 + $0xb0] sm:$0xff]
        %v415 = vld [vmem:[%s391 + $0xb8] sm:$0x3]
        %v416 = vld [vmem:[%s391 + $0xc0] sm:$0xff]
        %v417 = vld [vmem:[%s391 + $0xc8] sm:$0xff]
        %v418 = vld [vmem:[%s391 + $0xd0] sm:$0x3]
        %v419 = vld [vmem:[%s391 + $0xd8] sm:$0xff]
        %v420 = vld [vmem:[%s391 + $0xe0] sm:$0xff]
        %v421 = vld [vmem:[%s391 + $0xe8] sm:$0x3]
        %v422 = vld [vmem:[%s391 + $0xf0] sm:$0xff]
        %v423 = vld [vmem:[%s391 + $0xf8] sm:$0xff]
        %v424 = vld [vmem:[%s391 + $0x100] sm:$0x3]
        %v425 = vld [vmem:[%s391 + $0x108] sm:$0xff]
        %v426 = vld [vmem:[%s391 + $0x110] sm:$0xff]
        %v427 = vld [vmem:[%s391 + $0x118] sm:$0x3]
        %v428 = vld [vmem:[%s391 + $0x120] sm:$0xff]
        %v429 = vld [vmem:[%s391 + $0x128] sm:$0xff]
        %v430 = vld [vmem:[%s391 + $0x130] sm:$0x3]
        %v431 = vld [vmem:[%s391 + $0x138] sm:$0xff]
        %v432 = vld [vmem:[%s391 + $0x140] sm:$0xff]
        %v433 = vld [vmem:[%s391 + $0x148] sm:$0x3]
        %v434 = vld [vmem:[%s391 + $0x150] sm:$0xff]
        %v435 = vld [vmem:[%s391 + $0x158] sm:$0xff]
        %v436 = vld [vmem:[%s391 + $0x160] sm:$0x3]
        %v437 = vld [vmem:[%s391 + $0x168] sm:$0xff]
        %v438 = vld [vmem:[%s391 + $0x170] sm:$0xff]
        %v439 = vld [vmem:[%s391 + $0x178] sm:$0x3]
        %v440 = vld [vmem:[%s391 + $0x180] sm:$0xff]
        %v441 = vld [vmem:[%s391 + $0x188] sm:$0xff]
        %v442 = vld [vmem:[%s391 + $0x190] sm:$0x3]
        %v443 = vld [vmem:[%s391 + $0x198] sm:$0xff]
        %v444 = vld [vmem:[%s391 + $0x1a0] sm:$0xff]
        %v445 = vld [vmem:[%s391 + $0x1a8] sm:$0x3]
        %v446 = vlaneseq
        %v447 = vshrl.u32 %v446, 7
        %v448 = vsub.s32 0, %v447
        %v449 = vrot.slane %v386, %v448
        %v450 = vmul.f32 %v392, %v449
        %v451 = vmul.f32 %v393, %v449
        %v452 = vmul.f32 %v395, %v449
        %v453 = vmul.f32 %v396, %v449
        %v454 = vmul.f32 %v398, %v449
        %v455 = vmul.f32 %v399, %v449
        %v456 = vmul.f32 %v401, %v449
        %v457 = vmul.f32 %v402, %v449
        %v458 = vmul.f32 %v404, %v449
        %v459 = vmul.f32 %v405, %v449
        %v460 = vmul.f32 %v407, %v449
        %v461 = vmul.f32 %v408, %v449
        %v462 = vmul.f32 %v410, %v449
        %v463 = vmul.f32 %v411, %v449
        %v464 = vmul.f32 %v413, %v449
        %v465 = vmul.f32 %v414, %v449
        %v466 = vmul.f32 %v416, %v449
        %v467 = vmul.f32 %v417, %v449
        %v468 = vmul.f32 %v419, %v449
        %v469 = vmul.f32 %v420, %v449
        %v470 = vmul.f32 %v422, %v449
        %v471 = vmul.f32 %v423, %v449
        %v472 = vmul.f32 %v425, %v449
        %v473 = vmul.f32 %v426, %v449
        %v474 = vmul.f32 %v428, %v449
        %v475 = vmul.f32 %v429, %v449
        %v476 = vmul.f32 %v431, %v449
        %v477 = vmul.f32 %v432, %v449
        %v478 = vmul.f32 %v434, %v449
        %v479 = vmul.f32 %v435, %v449
        %v480 = vmul.f32 %v437, %v449
        %v481 = vmul.f32 %v438, %v449
        %v482 = vadd.f32 %v450, 0.0
        %v483 = vadd.f32 %v451, 0.0
        %v484 = vadd.f32 %v452, 0.0
        %v485 = vadd.f32 %v453, 0.0
        %v486 = vadd.f32 %v454, 0.0
        %v487 = vadd.f32 %v455, 0.0
        %v488 = vadd.f32 %v456, 0.0
        %v489 = vadd.f32 %v457, 0.0
        %v490 = vadd.f32 %v458, 0.0
        %v491 = vadd.f32 %v459, 0.0
        %v492 = vadd.f32 %v460, 0.0
        %v493 = vadd.f32 %v461, 0.0
        %v494 = vadd.f32 %v462, 0.0
        %v495 = vadd.f32 %v463, 0.0
        %v496 = vadd.f32 %v464, 0.0
        %v497 = vadd.f32 %v465, 0.0
        %v498 = vadd.f32 %v466, 0.0
        %v499 = vadd.f32 %v467, 0.0
        %v500 = vadd.f32 %v468, 0.0
        %v501 = vadd.f32 %v469, 0.0
        %v502 = vadd.f32 %v470, 0.0
        %v503 = vadd.f32 %v471, 0.0
        %v504 = vadd.f32 %v472, 0.0
        %v505 = vadd.f32 %v473, 0.0
        %v506 = vadd.f32 %v474, 0.0
        %v507 = vadd.f32 %v475, 0.0
        %v508 = vadd.f32 %v476, 0.0
        %v509 = vadd.f32 %v477, 0.0
        %v510 = vadd.f32 %v478, 0.0
        %v511 = vadd.f32 %v479, 0.0
        %v512 = vadd.f32 %v480, 0.0
        %v513 = vadd.f32 %v481, 0.0
        %v514 = vlaneseq
        %v515 = vshrl.u32 %v514, 7
        %v516 = vsub.s32 0, %v515
        %v517 = vrot.slane %v387, %v516
        %v518 = vmul.f32 %v395, %v517
        %v519 = vmul.f32 %v396, %v517
        %v520 = vmul.f32 %v398, %v517
        %v521 = vmul.f32 %v399, %v517
        %v522 = vmul.f32 %v401, %v517
        %v523 = vmul.f32 %v402, %v517
        %v524 = vmul.f32 %v404, %v517
        %v525 = vmul.f32 %v405, %v517
        %v526 = vmul.f32 %v407, %v517
        %v527 = vmul.f32 %v408, %v517
        %v528 = vmul.f32 %v410, %v517
        %v529 = vmul.f32 %v411, %v517
        %v530 = vmul.f32 %v413, %v517
        %v531 = vmul.f32 %v414, %v517
        %v532 = vmul.f32 %v416, %v517
        %v533 = vmul.f32 %v417, %v517
        %v534 = vmul.f32 %v419, %v517
        %v535 = vmul.f32 %v420, %v517
        %v536 = vmul.f32 %v422, %v517
        %v537 = vmul.f32 %v423, %v517
        %v538 = vmul.f32 %v425, %v517
        %v539 = vmul.f32 %v426, %v517
        %v540 = vmul.f32 %v428, %v517
        %v541 = vmul.f32 %v429, %v517
        %v542 = vmul.f32 %v431, %v517
        %v543 = vmul.f32 %v432, %v517
        %v544 = vmul.f32 %v434, %v517
        %v545 = vmul.f32 %v435, %v517
        %v546 = vmul.f32 %v437, %v517
        %v547 = vmul.f32 %v438, %v517
        %v548 = vmul.f32 %v440, %v517
        %v549 = vmul.f32 %v441, %v517
        %v550 = vadd.f32 %v482, %v518
        %v551 = vadd.f32 %v483, %v519
        %v552 = vadd.f32 %v484, %v520
        %v553 = vadd.f32 %v485, %v521
        %v554 = vadd.f32 %v486, %v522
        %v555 = vadd.f32 %v487, %v523
        %v556 = vadd.f32 %v488, %v524
        %v557 = vadd.f32 %v489, %v525
        %v558 = vadd.f32 %v490, %v526
        %v559 = vadd.f32 %v491, %v527
        %v560 = vadd.f32 %v492, %v528
        %v561 = vadd.f32 %v493, %v529
        %v562 = vadd.f32 %v494, %v530
        %v563 = vadd.f32 %v495, %v531
        %v564 = vadd.f32 %v496, %v532
        %v565 = vadd.f32 %v497, %v533
        %v566 = vadd.f32 %v498, %v534
        %v567 = vadd.f32 %v499, %v535
        %v568 = vadd.f32 %v500, %v536
        %v569 = vadd.f32 %v501, %v537
        %v570 = vadd.f32 %v502, %v538
        %v571 = vadd.f32 %v503, %v539
        %v572 = vadd.f32 %v504, %v540
        %v573 = vadd.f32 %v505, %v541
        %v574 = vadd.f32 %v506, %v542
        %v575 = vadd.f32 %v507, %v543
        %v576 = vadd.f32 %v508, %v544
        %v577 = vadd.f32 %v509, %v545
        %v578 = vadd.f32 %v510, %v546
        %v579 = vadd.f32 %v511, %v547
        %v580 = vadd.f32 %v512, %v548
        %v581 = vadd.f32 %v513, %v549
        %v582 = vlaneseq
        %v583 = vshrl.u32 %v582, 7
        %v584 = vsub.s32 0, %v583
        %v585 = vrot.slane %v388, %v584
        %v586 = vmul.f32 %v398, %v585
        %v587 = vmul.f32 %v399, %v585
        %v588 = vmul.f32 %v401, %v585
        %v589 = vmul.f32 %v402, %v585
        %v590 = vmul.f32 %v404, %v585
        %v591 = vmul.f32 %v405, %v585
        %v592 = vmul.f32 %v407, %v585
        %v593 = vmul.f32 %v408, %v585
        %v594 = vmul.f32 %v410, %v585
        %v595 = vmul.f32 %v411, %v585
        %v596 = vmul.f32 %v413, %v585
        %v597 = vmul.f32 %v414, %v585
        %v598 = vmul.f32 %v416, %v585
        %v599 = vmul.f32 %v417, %v585
        %v600 = vmul.f32 %v419, %v585
        %v601 = vmul.f32 %v420, %v585
        %v602 = vmul.f32 %v422, %v585
        %v603 = vmul.f32 %v423, %v585
        %v604 = vmul.f32 %v425, %v585
        %v605 = vmul.f32 %v426, %v585
        %v606 = vmul.f32 %v428, %v585
        %v607 = vmul.f32 %v429, %v585
        %v608 = vmul.f32 %v431, %v585
        %v609 = vmul.f32 %v432, %v585
        %v610 = vmul.f32 %v434, %v585
        %v611 = vmul.f32 %v435, %v585
        %v612 = vmul.f32 %v437, %v585
        %v613 = vmul.f32 %v438, %v585
        %v614 = vmul.f32 %v440, %v585
        %v615 = vmul.f32 %v441, %v585
        %v616 = vmul.f32 %v443, %v585
        %v617 = vmul.f32 %v444, %v585
        %v618 = vadd.f32 %v550, %v586
        %v619 = vadd.f32 %v551, %v587
        %v620 = vadd.f32 %v552, %v588
        %v621 = vadd.f32 %v553, %v589
        %v622 = vadd.f32 %v554, %v590
        %v623 = vadd.f32 %v555, %v591
        %v624 = vadd.f32 %v556, %v592
        %v625 = vadd.f32 %v557, %v593
        %v626 = vadd.f32 %v558, %v594
        %v627 = vadd.f32 %v559, %v595
        %v628 = vadd.f32 %v560, %v596
        %v629 = vadd.f32 %v561, %v597
        %v630 = vadd.f32 %v562, %v598
        %v631 = vadd.f32 %v563, %v599
        %v632 = vadd.f32 %v564, %v600
        %v633 = vadd.f32 %v565, %v601
        %v634 = vadd.f32 %v566, %v602
        %v635 = vadd.f32 %v567, %v603
        %v636 = vadd.f32 %v568, %v604
        %v637 = vadd.f32 %v569, %v605
        %v638 = vadd.f32 %v570, %v606
        %v639 = vadd.f32 %v571, %v607
        %v640 = vadd.f32 %v572, %v608
        %v641 = vadd.f32 %v573, %v609
        %v642 = vadd.f32 %v574, %v610
        %v643 = vadd.f32 %v575, %v611
        %v644 = vadd.f32 %v576, %v612
        %v645 = vadd.f32 %v577, %v613
        %v646 = vadd.f32 %v578, %v614
        %v647 = vadd.f32 %v579, %v615
        %v648 = vadd.f32 %v580, %v616
        %v649 = vadd.f32 %v581, %v617
        %v650 = vlaneseq
        %v651 = vshrl.u32 %v650, 7
        %v652 = vsub.s32 1, %v651
        %v653 = vrot.slane %v386, %v652
        %v654 = vmul.f32 %v392, %v653
        %v655 = vmul.f32 %v393, %v653
        %v656 = vmul.f32 %v394, %v653
        %v657 = vmul.f32 %v395, %v653
        %v658 = vmul.f32 %v396, %v653
        %v659 = vmul.f32 %v397, %v653
        %v660 = vmul.f32 %v398, %v653
        %v661 = vmul.f32 %v399, %v653
        %v662 = vmul.f32 %v400, %v653
        %v663 = vmul.f32 %v401, %v653
        %v664 = vmul.f32 %v402, %v653
        %v665 = vmul.f32 %v403, %v653
        %v666 = vmul.f32 %v404, %v653
        %v667 = vmul.f32 %v405, %v653
        %v668 = vmul.f32 %v406, %v653
        %v669 = vmul.f32 %v407, %v653
        %v670 = vmul.f32 %v408, %v653
        %v671 = vmul.f32 %v409, %v653
        %v672 = vmul.f32 %v410, %v653
        %v673 = vmul.f32 %v411, %v653
        %v674 = vmul.f32 %v412, %v653
        %v675 = vmul.f32 %v413, %v653
        %v676 = vmul.f32 %v414, %v653
        %v677 = vmul.f32 %v415, %v653
        %v678 = vmul.f32 %v416, %v653
        %v679 = vmul.f32 %v417, %v653
        %v680 = vmul.f32 %v418, %v653
        %v681 = vmul.f32 %v419, %v653
        %v682 = vmul.f32 %v420, %v653
        %v683 = vmul.f32 %v421, %v653
        %v684 = vmul.f32 %v422, %v653
        %v685 = vmul.f32 %v423, %v653
        %v686 = vmul.f32 %v424, %v653
        %v687 = vmul.f32 %v425, %v653
        %v688 = vmul.f32 %v426, %v653
        %v689 = vmul.f32 %v427, %v653
        %v690 = vmul.f32 %v428, %v653
        %v691 = vmul.f32 %v429, %v653
        %v692 = vmul.f32 %v430, %v653
        %v693 = vmul.f32 %v431, %v653
        %v694 = vmul.f32 %v432, %v653
        %v695 = vmul.f32 %v433, %v653
        %v696 = vmul.f32 %v434, %v653
        %v697 = vmul.f32 %v435, %v653
        %v698 = vmul.f32 %v436, %v653
        %v699 = vmul.f32 %v437, %v653
        %v700 = vmul.f32 %v438, %v653
        %v701 = vmul.f32 %v439, %v653
        %vm750 = vcmask 1046528
        %v751 = vrot.slane %v654, 1
        %v752 = vrot.slane %v655, 1
        %v753 = vsel %vm750, %v751, %v752
        %v754 = vrot.slane %v656, 1
        %v755 = vsel %vm750, %v752, %v754
        %v756 = vrot.slane %v657, 1
        %v757 = vrot.slane %v658, 1
        %v758 = vsel %vm750, %v756, %v757
        %v759 = vrot.slane %v659, 1
        %v760 = vsel %vm750, %v757, %v759
        %v761 = vrot.slane %v660, 1
        %v762 = vrot.slane %v661, 1
        %v763 = vsel %vm750, %v761, %v762
        %v764 = vrot.slane %v662, 1
        %v765 = vsel %vm750, %v762, %v764
        %v766 = vrot.slane %v663, 1
        %v767 = vrot.slane %v664, 1
        %v768 = vsel %vm750, %v766, %v767
        %v769 = vrot.slane %v665, 1
        %v770 = vsel %vm750, %v767, %v769
        %v771 = vrot.slane %v666, 1
        %v772 = vrot.slane %v667, 1
        %v773 = vsel %vm750, %v771, %v772
        %v774 = vrot.slane %v668, 1
        %v775 = vsel %vm750, %v772, %v774
        %v776 = vrot.slane %v669, 1
        %v777 = vrot.slane %v670, 1
        %v778 = vsel %vm750, %v776, %v777
        %v779 = vrot.slane %v671, 1
        %v780 = vsel %vm750, %v777, %v779
        %v781 = vrot.slane %v672, 1
        %v782 = vrot.slane %v673, 1
        %v783 = vsel %vm750, %v781, %v782
        %v784 = vrot.slane %v674, 1
        %v785 = vsel %vm750, %v782, %v784
        %v786 = vrot.slane %v675, 1
        %v787 = vrot.slane %v676, 1
        %v788 = vsel %vm750, %v786, %v787
        %v789 = vrot.slane %v677, 1
        %v790 = vsel %vm750, %v787, %v789
        %v791 = vrot.slane %v678, 1
        %v792 = vrot.slane %v679, 1
        %v793 = vsel %vm750, %v791, %v792
        %v794 = vrot.slane %v680, 1
        %v795 = vsel %vm750, %v792, %v794
        %v796 = vrot.slane %v681, 1
        %v797 = vrot.slane %v682, 1
        %v798 = vsel %vm750, %v796, %v797
        %v799 = vrot.slane %v683, 1
        %v800 = vsel %vm750, %v797, %v799
        %v801 = vrot.slane %v684, 1
        %v802 = vrot.slane %v685, 1
        %v803 = vsel %vm750, %v801, %v802
        %v804 = vrot.slane %v686, 1
        %v805 = vsel %vm750, %v802, %v804
        %v806 = vrot.slane %v687, 1
        %v807 = vrot.slane %v688, 1
        %v808 = vsel %vm750, %v806, %v807
        %v809 = vrot.slane %v689, 1
        %v810 = vsel %vm750, %v807, %v809
        %v811 = vrot.slane %v690, 1
        %v812 = vrot.slane %v691, 1
        %v813 = vsel %vm750, %v811, %v812
        %v814 = vrot.slane %v692, 1
        %v815 = vsel %vm750, %v812, %v814
        %v816 = vrot.slane %v693, 1
        %v817 = vrot.slane %v694, 1
        %v818 = vsel %vm750, %v816, %v817
        %v819 = vrot.slane %v695, 1
        %v820 = vsel %vm750, %v817, %v819
        %v821 = vrot.slane %v696, 1
        %v822 = vrot.slane %v697, 1
        %v823 = vsel %vm750, %v821, %v822
        %v824 = vrot.slane %v698, 1
        %v825 = vsel %vm750, %v822, %v824
        %v826 = vrot.slane %v699, 1
        %v827 = vrot.slane %v700, 1
        %v828 = vsel %vm750, %v826, %v827
        %v829 = vrot.slane %v701, 1
        %v830 = vsel %vm750, %v827, %v829
        %v863 = vadd.f32 %v618, %v753
        %v864 = vadd.f32 %v619, %v755
        %v865 = vadd.f32 %v620, %v758
        %v866 = vadd.f32 %v621, %v760
        %v867 = vadd.f32 %v622, %v763
        %v868 = vadd.f32 %v623, %v765
        %v869 = vadd.f32 %v624, %v768
        %v870 = vadd.f32 %v625, %v770
        %v871 = vadd.f32 %v626, %v773
        %v872 = vadd.f32 %v627, %v775
        %v873 = vadd.f32 %v628, %v778
        %v874 = vadd.f32 %v629, %v780
        %v875 = vadd.f32 %v630, %v783
        %v876 = vadd.f32 %v631, %v785
        %v877 = vadd.f32 %v632, %v788
        %v878 = vadd.f32 %v633, %v790
        %v879 = vadd.f32 %v634, %v793
        %v880 = vadd.f32 %v635, %v795
        %v881 = vadd.f32 %v636, %v798
        %v882 = vadd.f32 %v637, %v800
        %v883 = vadd.f32 %v638, %v803
        %v884 = vadd.f32 %v639, %v805
        %v885 = vadd.f32 %v640, %v808
        %v886 = vadd.f32 %v641, %v810
        %v887 = vadd.f32 %v642, %v813
        %v888 = vadd.f32 %v643, %v815
        %v889 = vadd.f32 %v644, %v818
        %v890 = vadd.f32 %v645, %v820
        %v891 = vadd.f32 %v646, %v823
        %v892 = vadd.f32 %v647, %v825
        %v893 = vadd.f32 %v648, %v828
        %v894 = vadd.f32 %v649, %v830
        %v895 = vlaneseq
        %v896 = vshrl.u32 %v895, 7
        %v897 = vsub.s32 1, %v896
        %v898 = vrot.slane %v387, %v897
        %v899 = vmul.f32 %v395, %v898
        %v900 = vmul.f32 %v396, %v898
        %v901 = vmul.f32 %v397, %v898
        %v902 = vmul.f32 %v398, %v898
        %v903 = vmul.f32 %v399, %v898
        %v904 = vmul.f32 %v400, %v898
        %v905 = vmul.f32 %v401, %v898
        %v906 = vmul.f32 %v402, %v898
        %v907 = vmul.f32 %v403, %v898
        %v908 = vmul.f32 %v404, %v898
        %v909 = vmul.f32 %v405, %v898
        %v910 = vmul.f32 %v406, %v898
        %v911 = vmul.f32 %v407, %v898
        %v912 = vmul.f32 %v408, %v898
        %v913 = vmul.f32 %v409, %v898
        %v914 = vmul.f32 %v410, %v898
        %v915 = vmul.f32 %v411, %v898
        %v916 = vmul.f32 %v412, %v898
        %v917 = vmul.f32 %v413, %v898
        %v918 = vmul.f32 %v414, %v898
        %v919 = vmul.f32 %v415, %v898
        %v920 = vmul.f32 %v416, %v898
        %v921 = vmul.f32 %v417, %v898
        %v922 = vmul.f32 %v418, %v898
        %v923 = vmul.f32 %v419, %v898
        %v924 = vmul.f32 %v420, %v898
        %v925 = vmul.f32 %v421, %v898
        %v926 = vmul.f32 %v422, %v898
        %v927 = vmul.f32 %v423, %v898
        %v928 = vmul.f32 %v424, %v898
        %v929 = vmul.f32 %v425, %v898
        %v930 = vmul.f32 %v426, %v898
        %v931 = vmul.f32 %v427, %v898
        %v932 = vmul.f32 %v428, %v898
        %v933 = vmul.f32 %v429, %v898
        %v934 = vmul.f32 %v430, %v898
        %v935 = vmul.f32 %v431, %v898
        %v936 = vmul.f32 %v432, %v898
        %v937 = vmul.f32 %v433, %v898
        %v938 = vmul.f32 %v434, %v898
        %v939 = vmul.f32 %v435, %v898
        %v940 = vmul.f32 %v436, %v898
        %v941 = vmul.f32 %v437, %v898
        %v942 = vmul.f32 %v438, %v898
        %v943 = vmul.f32 %v439, %v898
        %v944 = vmul.f32 %v440, %v898
        %v945 = vmul.f32 %v441, %v898
        %v946 = vmul.f32 %v442, %v898
        %v995 = vrot.slane %v899, 1
        %v996 = vrot.slane %v900, 1
        %v997 = vsel %vm750, %v995, %v996
        %v998 = vrot.slane %v901, 1
        %v999 = vsel %vm750, %v996, %v998
        %v1000 = vrot.slane %v902, 1
        %v1001 = vrot.slane %v903, 1
        %v1002 = vsel %vm750, %v1000, %v1001
        %v1003 = vrot.slane %v904, 1
        %v1004 = vsel %vm750, %v1001, %v1003
        %v1005 = vrot.slane %v905, 1
        %v1006 = vrot.slane %v906, 1
        %v1007 = vsel %vm750, %v1005, %v1006
        %v1008 = vrot.slane %v907, 1
        %v1009 = vsel %vm750, %v1006, %v1008
        %v1010 = vrot.slane %v908, 1
        %v1011 = vrot.slane %v909, 1
        %v1012 = vsel %vm750, %v1010, %v1011
        %v1013 = vrot.slane %v910, 1
        %v1014 = vsel %vm750, %v1011, %v1013
        %v1015 = vrot.slane %v911, 1
        %v1016 = vrot.slane %v912, 1
        %v1017 = vsel %vm750, %v1015, %v1016
        %v1018 = vrot.slane %v913, 1
        %v1019 = vsel %vm750, %v1016, %v1018
        %v1020 = vrot.slane %v914, 1
        %v1021 = vrot.slane %v915, 1
        %v1022 = vsel %vm750, %v1020, %v1021
        %v1023 = vrot.slane %v916, 1
        %v1024 = vsel %vm750, %v1021, %v1023
        %v1025 = vrot.slane %v917, 1
        %v1026 = vrot.slane %v918, 1
        %v1027 = vsel %vm750, %v1025, %v1026
        %v1028 = vrot.slane %v919, 1
        %v1029 = vsel %vm750, %v1026, %v1028
        %v1030 = vrot.slane %v920, 1
        %v1031 = vrot.slane %v921, 1
        %v1032 = vsel %vm750, %v1030, %v1031
        %v1033 = vrot.slane %v922, 1
        %v1034 = vsel %vm750, %v1031, %v1033
        %v1035 = vrot.slane %v923, 1
        %v1036 = vrot.slane %v924, 1
        %v1037 = vsel %vm750, %v1035, %v1036
        %v1038 = vrot.slane %v925, 1
        %v1039 = vsel %vm750, %v1036, %v1038
        %v1040 = vrot.slane %v926, 1
        %v1041 = vrot.slane %v927, 1
        %v1042 = vsel %vm750, %v1040, %v1041
        %v1043 = vrot.slane %v928, 1
        %v1044 = vsel %vm750, %v1041, %v1043
        %v1045 = vrot.slane %v929, 1
        %v1046 = vrot.slane %v930, 1
        %v1047 = vsel %vm750, %v1045, %v1046
        %v1048 = vrot.slane %v931, 1
        %v1049 = vsel %vm750, %v1046, %v1048
        %v1050 = vrot.slane %v932, 1
        %v1051 = vrot.slane %v933, 1
        %v1052 = vsel %vm750, %v1050, %v1051
        %v1053 = vrot.slane %v934, 1
        %v1054 = vsel %vm750, %v1051, %v1053
        %v1055 = vrot.slane %v935, 1
        %v1056 = vrot.slane %v936, 1
        %v1057 = vsel %vm750, %v1055, %v1056
        %v1058 = vrot.slane %v937, 1
        %v1059 = vsel %vm750, %v1056, %v1058
        %v1060 = vrot.slane %v938, 1
        %v1061 = vrot.slane %v939, 1
        %v1062 = vsel %vm750, %v1060, %v1061
        %v1063 = vrot.slane %v940, 1
        %v1064 = vsel %vm750, %v1061, %v1063
        %v1065 = vrot.slane %v941, 1
        %v1066 = vrot.slane %v942, 1
        %v1067 = vsel %vm750, %v1065, %v1066
        %v1068 = vrot.slane %v943, 1
        %v1069 = vsel %vm750, %v1066, %v1068
        %v1070 = vrot.slane %v944, 1
        %v1071 = vrot.slane %v945, 1
        %v1072 = vsel %vm750, %v1070, %v1071
        %v1073 = vrot.slane %v946, 1
        %v1074 = vsel %vm750, %v1071, %v1073
        %v1107 = vadd.f32 %v863, %v997
        %v1108 = vadd.f32 %v864, %v999
        %v1109 = vadd.f32 %v865, %v1002
        %v1110 = vadd.f32 %v866, %v1004
        %v1111 = vadd.f32 %v867, %v1007
        %v1112 = vadd.f32 %v868, %v1009
        %v1113 = vadd.f32 %v869, %v1012
        %v1114 = vadd.f32 %v870, %v1014
        %v1115 = vadd.f32 %v871, %v1017
        %v1116 = vadd.f32 %v872, %v1019
        %v1117 = vadd.f32 %v873, %v1022
        %v1118 = vadd.f32 %v874, %v1024
        %v1119 = vadd.f32 %v875, %v1027
        %v1120 = vadd.f32 %v876, %v1029
        %v1121 = vadd.f32 %v877, %v1032
        %v1122 = vadd.f32 %v878, %v1034
        %v1123 = vadd.f32 %v879, %v1037
        %v1124 = vadd.f32 %v880, %v1039
        %v1125 = vadd.f32 %v881, %v1042
        %v1126 = vadd.f32 %v882, %v1044
        %v1127 = vadd.f32 %v883, %v1047
        %v1128 = vadd.f32 %v884, %v1049
        %v1129 = vadd.f32 %v885, %v1052
        %v1130 = vadd.f32 %v886, %v1054
        %v1131 = vadd.f32 %v887, %v1057
        %v1132 = vadd.f32 %v888, %v1059
        %v1133 = vadd.f32 %v889, %v1062
        %v1134 = vadd.f32 %v890, %v1064
        %v1135 = vadd.f32 %v891, %v1067
        %v1136 = vadd.f32 %v892, %v1069
        %v1137 = vadd.f32 %v893, %v1072
        %v1138 = vadd.f32 %v894, %v1074
        %v1139 = vlaneseq
        %v1140 = vshrl.u32 %v1139, 7
        %v1141 = vsub.s32 1, %v1140
        %v1142 = vrot.slane %v388, %v1141
        %v1143 = vmul.f32 %v398, %v1142
        %v1144 = vmul.f32 %v399, %v1142
        %v1145 = vmul.f32 %v400, %v1142
        %v1146 = vmul.f32 %v401, %v1142
        %v1147 = vmul.f32 %v402, %v1142
        %v1148 = vmul.f32 %v403, %v1142
        %v1149 = vmul.f32 %v404, %v1142
        %v1150 = vmul.f32 %v405, %v1142
        %v1151 = vmul.f32 %v406, %v1142
        %v1152 = vmul.f32 %v407, %v1142
        %v1153 = vmul.f32 %v408, %v1142
        %v1154 = vmul.f32 %v409, %v1142
        %v1155 = vmul.f32 %v410, %v1142
        %v1156 = vmul.f32 %v411, %v1142
        %v1157 = vmul.f32 %v412, %v1142
        %v1158 = vmul.f32 %v413, %v1142
        %v1159 = vmul.f32 %v414, %v1142
        %v1160 = vmul.f32 %v415, %v1142
        %v1161 = vmul.f32 %v416, %v1142
        %v1162 = vmul.f32 %v417, %v1142
        %v1163 = vmul.f32 %v418, %v1142
        %v1164 = vmul.f32 %v419, %v1142
        %v1165 = vmul.f32 %v420, %v1142
        %v1166 = vmul.f32 %v421, %v1142
        %v1167 = vmul.f32 %v422, %v1142
        %v1168 = vmul.f32 %v423, %v1142
        %v1169 = vmul.f32 %v424, %v1142
        %v1170 = vmul.f32 %v425, %v1142
        %v1171 = vmul.f32 %v426, %v1142
        %v1172 = vmul.f32 %v427, %v1142
        %v1173 = vmul.f32 %v428, %v1142
        %v1174 = vmul.f32 %v429, %v1142
        %v1175 = vmul.f32 %v430, %v1142
        %v1176 = vmul.f32 %v431, %v1142
        %v1177 = vmul.f32 %v432, %v1142
        %v1178 = vmul.f32 %v433, %v1142
        %v1179 = vmul.f32 %v434, %v1142
        %v1180 = vmul.f32 %v435, %v1142
        %v1181 = vmul.f32 %v436, %v1142
        %v1182 = vmul.f32 %v437, %v1142
        %v1183 = vmul.f32 %v438, %v1142
        %v1184 = vmul.f32 %v439, %v1142
        %v1185 = vmul.f32 %v440, %v1142
        %v1186 = vmul.f32 %v441, %v1142
        %v1187 = vmul.f32 %v442, %v1142
        %v1188 = vmul.f32 %v443, %v1142
        %v1189 = vmul.f32 %v444, %v1142
        %v1190 = vmul.f32 %v445, %v1142
        %v1239 = vrot.slane %v1143, 1
        %v1240 = vrot.slane %v1144, 1
        %v1241 = vsel %vm750, %v1239, %v1240
        %v1242 = vrot.slane %v1145, 1
        %v1243 = vsel %vm750, %v1240, %v1242
        %v1244 = vrot.slane %v1146, 1
        %v1245 = vrot.slane %v1147, 1
        %v1246 = vsel %vm750, %v1244, %v1245
        %v1247 = vrot.slane %v1148, 1
        %v1248 = vsel %vm750, %v1245, %v1247
        %v1249 = vrot.slane %v1149, 1
        %v1250 = vrot.slane %v1150, 1
        %v1251 = vsel %vm750, %v1249, %v1250
        %v1252 = vrot.slane %v1151, 1
        %v1253 = vsel %vm750, %v1250, %v1252
        %v1254 = vrot.slane %v1152, 1
        %v1255 = vrot.slane %v1153, 1
        %v1256 = vsel %vm750, %v1254, %v1255
        %v1257 = vrot.slane %v1154, 1
        %v1258 = vsel %vm750, %v1255, %v1257
        %v1259 = vrot.slane %v1155, 1
        %v1260 = vrot.slane %v1156, 1
        %v1261 = vsel %vm750, %v1259, %v1260
        %v1262 = vrot.slane %v1157, 1
        %v1263 = vsel %vm750, %v1260, %v1262
        %v1264 = vrot.slane %v1158, 1
        %v1265 = vrot.slane %v1159, 1
        %v1266 = vsel %vm750, %v1264, %v1265
        %v1267 = vrot.slane %v1160, 1
        %v1268 = vsel %vm750, %v1265, %v1267
        %v1269 = vrot.slane %v1161, 1
        %v1270 = vrot.slane %v1162, 1
        %v1271 = vsel %vm750, %v1269, %v1270
        %v1272 = vrot.slane %v1163, 1
        %v1273 = vsel %vm750, %v1270, %v1272
        %v1274 = vrot.slane %v1164, 1
        %v1275 = vrot.slane %v1165, 1
        %v1276 = vsel %vm750, %v1274, %v1275
        %v1277 = vrot.slane %v1166, 1
        %v1278 = vsel %vm750, %v1275, %v1277
        %v1279 = vrot.slane %v1167, 1
        %v1280 = vrot.slane %v1168, 1
        %v1281 = vsel %vm750, %v1279, %v1280
        %v1282 = vrot.slane %v1169, 1
        %v1283 = vsel %vm750, %v1280, %v1282
        %v1284 = vrot.slane %v1170, 1
        %v1285 = vrot.slane %v1171, 1
        %v1286 = vsel %vm750, %v1284, %v1285
        %v1287 = vrot.slane %v1172, 1
        %v1288 = vsel %vm750, %v1285, %v1287
        %v1289 = vrot.slane %v1173, 1
        %v1290 = vrot.slane %v1174, 1
        %v1291 = vsel %vm750, %v1289, %v1290
        %v1292 = vrot.slane %v1175, 1
        %v1293 = vsel %vm750, %v1290, %v1292
        %v1294 = vrot.slane %v1176, 1
        %v1295 = vrot.slane %v1177, 1
        %v1296 = vsel %vm750, %v1294, %v1295
        %v1297 = vrot.slane %v1178, 1
        %v1298 = vsel %vm750, %v1295, %v1297
        %v1299 = vrot.slane %v1179, 1
        %v1300 = vrot.slane %v1180, 1
        %v1301 = vsel %vm750, %v1299, %v1300
        %v1302 = vrot.slane %v1181, 1
        %v1303 = vsel %vm750, %v1300, %v1302
        %v1304 = vrot.slane %v1182, 1
        %v1305 = vrot.slane %v1183, 1
        %v1306 = vsel %vm750, %v1304, %v1305
        %v1307 = vrot.slane %v1184, 1
        %v1308 = vsel %vm750, %v1305, %v1307
        %v1309 = vrot.slane %v1185, 1
        %v1310 = vrot.slane %v1186, 1
        %v1311 = vsel %vm750, %v1309, %v1310
        %v1312 = vrot.slane %v1187, 1
        %v1313 = vsel %vm750, %v1310, %v1312
        %v1314 = vrot.slane %v1188, 1
        %v1315 = vrot.slane %v1189, 1
        %v1316 = vsel %vm750, %v1314, %v1315
        %v1317 = vrot.slane %v1190, 1
        %v1318 = vsel %vm750, %v1315, %v1317
        %v1351 = vadd.f32 %v1107, %v1241
        %v1352 = vadd.f32 %v1108, %v1243
        %v1353 = vadd.f32 %v1109, %v1246
        %v1354 = vadd.f32 %v1110, %v1248
        %v1355 = vadd.f32 %v1111, %v1251
        %v1356 = vadd.f32 %v1112, %v1253
        %v1357 = vadd.f32 %v1113, %v1256
        %v1358 = vadd.f32 %v1114, %v1258
        %v1359 = vadd.f32 %v1115, %v1261
        %v1360 = vadd.f32 %v1116, %v1263
        %v1361 = vadd.f32 %v1117, %v1266
        %v1362 = vadd.f32 %v1118, %v1268
        %v1363 = vadd.f32 %v1119, %v1271
        %v1364 = vadd.f32 %v1120, %v1273
        %v1365 = vadd.f32 %v1121, %v1276
        %v1366 = vadd.f32 %v1122, %v1278
        %v1367 = vadd.f32 %v1123, %v1281
        %v1368 = vadd.f32 %v1124, %v1283
        %v1369 = vadd.f32 %v1125, %v1286
        %v1370 = vadd.f32 %v1126, %v1288
        %v1371 = vadd.f32 %v1127, %v1291
        %v1372 = vadd.f32 %v1128, %v1293
        %v1373 = vadd.f32 %v1129, %v1296
        %v1374 = vadd.f32 %v1130, %v1298
        %v1375 = vadd.f32 %v1131, %v1301
        %v1376 = vadd.f32 %v1132, %v1303
        %v1377 = vadd.f32 %v1133, %v1306
        %v1378 = vadd.f32 %v1134, %v1308
        %v1379 = vadd.f32 %v1135, %v1311
        %v1380 = vadd.f32 %v1136, %v1313
        %v1381 = vadd.f32 %v1137, %v1316
        %v1382 = vadd.f32 %v1138, %v1318
        %v1383 = vlaneseq
        %v1384 = vshrl.u32 %v1383, 7
        %v1385 = vsub.s32 2, %v1384
        %v1386 = vrot.slane %v386, %v1385
        %v1387 = vmul.f32 %v392, %v1386
        %v1388 = vmul.f32 %v393, %v1386
        %v1389 = vmul.f32 %v394, %v1386
        %v1390 = vmul.f32 %v395, %v1386
        %v1391 = vmul.f32 %v396, %v1386
        %v1392 = vmul.f32 %v397, %v1386
        %v1393 = vmul.f32 %v398, %v1386
        %v1394 = vmul.f32 %v399, %v1386
        %v1395 = vmul.f32 %v400, %v1386
        %v1396 = vmul.f32 %v401, %v1386
        %v1397 = vmul.f32 %v402, %v1386
        %v1398 = vmul.f32 %v403, %v1386
        %v1399 = vmul.f32 %v404, %v1386
        %v1400 = vmul.f32 %v405, %v1386
        %v1401 = vmul.f32 %v406, %v1386
        %v1402 = vmul.f32 %v407, %v1386
        %v1403 = vmul.f32 %v408, %v1386
        %v1404 = vmul.f32 %v409, %v1386
        %v1405 = vmul.f32 %v410, %v1386
        %v1406 = vmul.f32 %v411, %v1386
        %v1407 = vmul.f32 %v412, %v1386
        %v1408 = vmul.f32 %v413, %v1386
        %v1409 = vmul.f32 %v414, %v1386
        %v1410 = vmul.f32 %v415, %v1386
        %v1411 = vmul.f32 %v416, %v1386
        %v1412 = vmul.f32 %v417, %v1386
        %v1413 = vmul.f32 %v418, %v1386
        %v1414 = vmul.f32 %v419, %v1386
        %v1415 = vmul.f32 %v420, %v1386
        %v1416 = vmul.f32 %v421, %v1386
        %v1417 = vmul.f32 %v422, %v1386
        %v1418 = vmul.f32 %v423, %v1386
        %v1419 = vmul.f32 %v424, %v1386
        %v1420 = vmul.f32 %v425, %v1386
        %v1421 = vmul.f32 %v426, %v1386
        %v1422 = vmul.f32 %v427, %v1386
        %v1423 = vmul.f32 %v428, %v1386
        %v1424 = vmul.f32 %v429, %v1386
        %v1425 = vmul.f32 %v430, %v1386
        %v1426 = vmul.f32 %v431, %v1386
        %v1427 = vmul.f32 %v432, %v1386
        %v1428 = vmul.f32 %v433, %v1386
        %v1429 = vmul.f32 %v434, %v1386
        %v1430 = vmul.f32 %v435, %v1386
        %v1431 = vmul.f32 %v436, %v1386
        %v1432 = vmul.f32 %v437, %v1386
        %v1433 = vmul.f32 %v438, %v1386
        %v1434 = vmul.f32 %v439, %v1386
        %vm1483 = vcmask 1045504
        %v1484 = vrot.slane %v1387, 2
        %v1485 = vrot.slane %v1388, 2
        %v1486 = vsel %vm1483, %v1484, %v1485
        %v1487 = vrot.slane %v1389, 2
        %v1488 = vsel %vm1483, %v1485, %v1487
        %v1489 = vrot.slane %v1390, 2
        %v1490 = vrot.slane %v1391, 2
        %v1491 = vsel %vm1483, %v1489, %v1490
        %v1492 = vrot.slane %v1392, 2
        %v1493 = vsel %vm1483, %v1490, %v1492
        %v1494 = vrot.slane %v1393, 2
        %v1495 = vrot.slane %v1394, 2
        %v1496 = vsel %vm1483, %v1494, %v1495
        %v1497 = vrot.slane %v1395, 2
        %v1498 = vsel %vm1483, %v1495, %v1497
        %v1499 = vrot.slane %v1396, 2
        %v1500 = vrot.slane %v1397, 2
        %v1501 = vsel %vm1483, %v1499, %v1500
        %v1502 = vrot.slane %v1398, 2
        %v1503 = vsel %vm1483, %v1500, %v1502
        %v1504 = vrot.slane %v1399, 2
        %v1505 = vrot.slane %v1400, 2
        %v1506 = vsel %vm1483, %v1504, %v1505
        %v1507 = vrot.slane %v1401, 2
        %v1508 = vsel %vm1483, %v1505, %v1507
        %v1509 = vrot.slane %v1402, 2
        %v1510 = vrot.slane %v1403, 2
        %v1511 = vsel %vm1483, %v1509, %v1510
        %v1512 = vrot.slane %v1404, 2
        %v1513 = vsel %vm1483, %v1510, %v1512
        %v1514 = vrot.slane %v1405, 2
        %v1515 = vrot.slane %v1406, 2
        %v1516 = vsel %vm1483, %v1514, %v1515
        %v1517 = vrot.slane %v1407, 2
        %v1518 = vsel %vm1483, %v1515, %v1517
        %v1519 = vrot.slane %v1408, 2
        %v1520 = vrot.slane %v1409, 2
        %v1521 = vsel %vm1483, %v1519, %v1520
        %v1522 = vrot.slane %v1410, 2
        %v1523 = vsel %vm1483, %v1520, %v1522
        %v1524 = vrot.slane %v1411, 2
        %v1525 = vrot.slane %v1412, 2
        %v1526 = vsel %vm1483, %v1524, %v1525
        %v1527 = vrot.slane %v1413, 2
        %v1528 = vsel %vm1483, %v1525, %v1527
        %v1529 = vrot.slane %v1414, 2
        %v1530 = vrot.slane %v1415, 2
        %v1531 = vsel %vm1483, %v1529, %v1530
        %v1532 = vrot.slane %v1416, 2
        %v1533 = vsel %vm1483, %v1530, %v1532
        %v1534 = vrot.slane %v1417, 2
        %v1535 = vrot.slane %v1418, 2
        %v1536 = vsel %vm1483, %v1534, %v1535
        %v1537 = vrot.slane %v1419, 2
        %v1538 = vsel %vm1483, %v1535, %v1537
        %v1539 = vrot.slane %v1420, 2
        %v1540 = vrot.slane %v1421, 2
        %v1541 = vsel %vm1483, %v1539, %v1540
        %v1542 = vrot.slane %v1422, 2
        %v1543 = vsel %vm1483, %v1540, %v1542
        %v1544 = vrot.slane %v1423, 2
        %v1545 = vrot.slane %v1424, 2
        %v1546 = vsel %vm1483, %v1544, %v1545
        %v1547 = vrot.slane %v1425, 2
        %v1548 = vsel %vm1483, %v1545, %v1547
        %v1549 = vrot.slane %v1426, 2
        %v1550 = vrot.slane %v1427, 2
        %v1551 = vsel %vm1483, %v1549, %v1550
        %v1552 = vrot.slane %v1428, 2
        %v1553 = vsel %vm1483, %v1550, %v1552
        %v1554 = vrot.slane %v1429, 2
        %v1555 = vrot.slane %v1430, 2
        %v1556 = vsel %vm1483, %v1554, %v1555
        %v1557 = vrot.slane %v1431, 2
        %v1558 = vsel %vm1483, %v1555, %v1557
        %v1559 = vrot.slane %v1432, 2
        %v1560 = vrot.slane %v1433, 2
        %v1561 = vsel %vm1483, %v1559, %v1560
        %v1562 = vrot.slane %v1434, 2
        %v1563 = vsel %vm1483, %v1560, %v1562
        %v1596 = vadd.f32 %v1351, %v1486
        %v1597 = vadd.f32 %v1352, %v1488
        %v1598 = vadd.f32 %v1353, %v1491
        %v1599 = vadd.f32 %v1354, %v1493
        %v1600 = vadd.f32 %v1355, %v1496
        %v1601 = vadd.f32 %v1356, %v1498
        %v1602 = vadd.f32 %v1357, %v1501
        %v1603 = vadd.f32 %v1358, %v1503
        %v1604 = vadd.f32 %v1359, %v1506
        %v1605 = vadd.f32 %v1360, %v1508
        %v1606 = vadd.f32 %v1361, %v1511
        %v1607 = vadd.f32 %v1362, %v1513
        %v1608 = vadd.f32 %v1363, %v1516
        %v1609 = vadd.f32 %v1364, %v1518
        %v1610 = vadd.f32 %v1365, %v1521
        %v1611 = vadd.f32 %v1366, %v1523
        %v1612 = vadd.f32 %v1367, %v1526
        %v1613 = vadd.f32 %v1368, %v1528
        %v1614 = vadd.f32 %v1369, %v1531
        %v1615 = vadd.f32 %v1370, %v1533
        %v1616 = vadd.f32 %v1371, %v1536
        %v1617 = vadd.f32 %v1372, %v1538
        %v1618 = vadd.f32 %v1373, %v1541
        %v1619 = vadd.f32 %v1374, %v1543
        %v1620 = vadd.f32 %v1375, %v1546
        %v1621 = vadd.f32 %v1376, %v1548
        %v1622 = vadd.f32 %v1377, %v1551
        %v1623 = vadd.f32 %v1378, %v1553
        %v1624 = vadd.f32 %v1379, %v1556
        %v1625 = vadd.f32 %v1380, %v1558
        %v1626 = vadd.f32 %v1381, %v1561
        %v1627 = vadd.f32 %v1382, %v1563
        %v1628 = vlaneseq
        %v1629 = vshrl.u32 %v1628, 7
        %v1630 = vsub.s32 2, %v1629
        %v1631 = vrot.slane %v387, %v1630
        %v1632 = vmul.f32 %v395, %v1631
        %v1633 = vmul.f32 %v396, %v1631
        %v1634 = vmul.f32 %v397, %v1631
        %v1635 = vmul.f32 %v398, %v1631
        %v1636 = vmul.f32 %v399, %v1631
        %v1637 = vmul.f32 %v400, %v1631
        %v1638 = vmul.f32 %v401, %v1631
        %v1639 = vmul.f32 %v402, %v1631
        %v1640 = vmul.f32 %v403, %v1631
        %v1641 = vmul.f32 %v404, %v1631
        %v1642 = vmul.f32 %v405, %v1631
        %v1643 = vmul.f32 %v406, %v1631
        %v1644 = vmul.f32 %v407, %v1631
        %v1645 = vmul.f32 %v408, %v1631
        %v1646 = vmul.f32 %v409, %v1631
        %v1647 = vmul.f32 %v410, %v1631
        %v1648 = vmul.f32 %v411, %v1631
        %v1649 = vmul.f32 %v412, %v1631
        %v1650 = vmul.f32 %v413, %v1631
        %v1651 = vmul.f32 %v414, %v1631
        %v1652 = vmul.f32 %v415, %v1631
        %v1653 = vmul.f32 %v416, %v1631
        %v1654 = vmul.f32 %v417, %v1631
        %v1655 = vmul.f32 %v418, %v1631
        %v1656 = vmul.f32 %v419, %v1631
        %v1657 = vmul.f32 %v420, %v1631
        %v1658 = vmul.f32 %v421, %v1631
        %v1659 = vmul.f32 %v422, %v1631
        %v1660 = vmul.f32 %v423, %v1631
        %v1661 = vmul.f32 %v424, %v1631
        %v1662 = vmul.f32 %v425, %v1631
        %v1663 = vmul.f32 %v426, %v1631
        %v1664 = vmul.f32 %v427, %v1631
        %v1665 = vmul.f32 %v428, %v1631
        %v1666 = vmul.f32 %v429, %v1631
        %v1667 = vmul.f32 %v430, %v1631
        %v1668 = vmul.f32 %v431, %v1631
        %v1669 = vmul.f32 %v432, %v1631
        %v1670 = vmul.f32 %v433, %v1631
        %v1671 = vmul.f32 %v434, %v1631
        %v1672 = vmul.f32 %v435, %v1631
        %v1673 = vmul.f32 %v436, %v1631
        %v1674 = vmul.f32 %v437, %v1631
        %v1675 = vmul.f32 %v438, %v1631
        %v1676 = vmul.f32 %v439, %v1631
        %v1677 = vmul.f32 %v440, %v1631
        %v1678 = vmul.f32 %v441, %v1631
        %v1679 = vmul.f32 %v442, %v1631
        %v1728 = vrot.slane %v1632, 2
        %v1729 = vrot.slane %v1633, 2
        %v1730 = vsel %vm1483, %v1728, %v1729
        %v1731 = vrot.slane %v1634, 2
        %v1732 = vsel %vm1483, %v1729, %v1731
        %v1733 = vrot.slane %v1635, 2
        %v1734 = vrot.slane %v1636, 2
        %v1735 = vsel %vm1483, %v1733, %v1734
        %v1736 = vrot.slane %v1637, 2
        %v1737 = vsel %vm1483, %v1734, %v1736
        %v1738 = vrot.slane %v1638, 2
        %v1739 = vrot.slane %v1639, 2
        %v1740 = vsel %vm1483, %v1738, %v1739
        %v1741 = vrot.slane %v1640, 2
        %v1742 = vsel %vm1483, %v1739, %v1741
        %v1743 = vrot.slane %v1641, 2
        %v1744 = vrot.slane %v1642, 2
        %v1745 = vsel %vm1483, %v1743, %v1744
        %v1746 = vrot.slane %v1643, 2
        %v1747 = vsel %vm1483, %v1744, %v1746
        %v1748 = vrot.slane %v1644, 2
        %v1749 = vrot.slane %v1645, 2
        %v1750 = vsel %vm1483, %v1748, %v1749
        %v1751 = vrot.slane %v1646, 2
        %v1752 = vsel %vm1483, %v1749, %v1751
        %v1753 = vrot.slane %v1647, 2
        %v1754 = vrot.slane %v1648, 2
        %v1755 = vsel %vm1483, %v1753, %v1754
        %v1756 = vrot.slane %v1649, 2
        %v1757 = vsel %vm1483, %v1754, %v1756
        %v1758 = vrot.slane %v1650, 2
        %v1759 = vrot.slane %v1651, 2
        %v1760 = vsel %vm1483, %v1758, %v1759
        %v1761 = vrot.slane %v1652, 2
        %v1762 = vsel %vm1483, %v1759, %v1761
        %v1763 = vrot.slane %v1653, 2
        %v1764 = vrot.slane %v1654, 2
        %v1765 = vsel %vm1483, %v1763, %v1764
        %v1766 = vrot.slane %v1655, 2
        %v1767 = vsel %vm1483, %v1764, %v1766
        %v1768 = vrot.slane %v1656, 2
        %v1769 = vrot.slane %v1657, 2
        %v1770 = vsel %vm1483, %v1768, %v1769
        %v1771 = vrot.slane %v1658, 2
        %v1772 = vsel %vm1483, %v1769, %v1771
        %v1773 = vrot.slane %v1659, 2
        %v1774 = vrot.slane %v1660, 2
        %v1775 = vsel %vm1483, %v1773, %v1774
        %v1776 = vrot.slane %v1661, 2
        %v1777 = vsel %vm1483, %v1774, %v1776
        %v1778 = vrot.slane %v1662, 2
        %v1779 = vrot.slane %v1663, 2
        %v1780 = vsel %vm1483, %v1778, %v1779
        %v1781 = vrot.slane %v1664, 2
        %v1782 = vsel %vm1483, %v1779, %v1781
        %v1783 = vrot.slane %v1665, 2
        %v1784 = vrot.slane %v1666, 2
        %v1785 = vsel %vm1483, %v1783, %v1784
        %v1786 = vrot.slane %v1667, 2
        %v1787 = vsel %vm1483, %v1784, %v1786
        %v1788 = vrot.slane %v1668, 2
        %v1789 = vrot.slane %v1669, 2
        %v1790 = vsel %vm1483, %v1788, %v1789
        %v1791 = vrot.slane %v1670, 2
        %v1792 = vsel %vm1483, %v1789, %v1791
        %v1793 = vrot.slane %v1671, 2
        %v1794 = vrot.slane %v1672, 2
        %v1795 = vsel %vm1483, %v1793, %v1794
        %v1796 = vrot.slane %v1673, 2
        %v1797 = vsel %vm1483, %v1794, %v1796
        %v1798 = vrot.slane %v1674, 2
        %v1799 = vrot.slane %v1675, 2
        %v1800 = vsel %vm1483, %v1798, %v1799
        %v1801 = vrot.slane %v1676, 2
        %v1802 = vsel %vm1483, %v1799, %v1801
        %v1803 = vrot.slane %v1677, 2
        %v1804 = vrot.slane %v1678, 2
        %v1805 = vsel %vm1483, %v1803, %v1804
        %v1806 = vrot.slane %v1679, 2
        %v1807 = vsel %vm1483, %v1804, %v1806
        %v1840 = vadd.f32 %v1596, %v1730
        %v1841 = vadd.f32 %v1597, %v1732
        %v1842 = vadd.f32 %v1598, %v1735
        %v1843 = vadd.f32 %v1599, %v1737
        %v1844 = vadd.f32 %v1600, %v1740
        %v1845 = vadd.f32 %v1601, %v1742
        %v1846 = vadd.f32 %v1602, %v1745
        %v1847 = vadd.f32 %v1603, %v1747
        %v1848 = vadd.f32 %v1604, %v1750
        %v1849 = vadd.f32 %v1605, %v1752
        %v1850 = vadd.f32 %v1606, %v1755
        %v1851 = vadd.f32 %v1607, %v1757
        %v1852 = vadd.f32 %v1608, %v1760
        %v1853 = vadd.f32 %v1609, %v1762
        %v1854 = vadd.f32 %v1610, %v1765
        %v1855 = vadd.f32 %v1611, %v1767
        %v1856 = vadd.f32 %v1612, %v1770
        %v1857 = vadd.f32 %v1613, %v1772
        %v1858 = vadd.f32 %v1614, %v1775
        %v1859 = vadd.f32 %v1615, %v1777
        %v1860 = vadd.f32 %v1616, %v1780
        %v1861 = vadd.f32 %v1617, %v1782
        %v1862 = vadd.f32 %v1618, %v1785
        %v1863 = vadd.f32 %v1619, %v1787
        %v1864 = vadd.f32 %v1620, %v1790
        %v1865 = vadd.f32 %v1621, %v1792
        %v1866 = vadd.f32 %v1622, %v1795
        %v1867 = vadd.f32 %v1623, %v1797
        %v1868 = vadd.f32 %v1624, %v1800
        %v1869 = vadd.f32 %v1625, %v1802
        %v1870 = vadd.f32 %v1626, %v1805
        %v1871 = vadd.f32 %v1627, %v1807
        %v1872 = vlaneseq
        %v1873 = vshrl.u32 %v1872, 7
        %v1874 = vsub.s32 2, %v1873
        %v1875 = vrot.slane %v388, %v1874
        %v1876 = vmul.f32 %v398, %v1875
        %v1877 = vmul.f32 %v399, %v1875
        %v1878 = vmul.f32 %v400, %v1875
        %v1879 = vmul.f32 %v401, %v1875
        %v1880 = vmul.f32 %v402, %v1875
        %v1881 = vmul.f32 %v403, %v1875
        %v1882 = vmul.f32 %v404, %v1875
        %v1883 = vmul.f32 %v405, %v1875
        %v1884 = vmul.f32 %v406, %v1875
        %v1885 = vmul.f32 %v407, %v1875
        %v1886 = vmul.f32 %v408, %v1875
        %v1887 = vmul.f32 %v409, %v1875
        %v1888 = vmul.f32 %v410, %v1875
        %v1889 = vmul.f32 %v411, %v1875
        %v1890 = vmul.f32 %v412, %v1875
        %v1891 = vmul.f32 %v413, %v1875
        %v1892 = vmul.f32 %v414, %v1875
        %v1893 = vmul.f32 %v415, %v1875
        %v1894 = vmul.f32 %v416, %v1875
        %v1895 = vmul.f32 %v417, %v1875
        %v1896 = vmul.f32 %v418, %v1875
        %v1897 = vmul.f32 %v419, %v1875
        %v1898 = vmul.f32 %v420, %v1875
        %v1899 = vmul.f32 %v421, %v1875
        %v1900 = vmul.f32 %v422, %v1875
        %v1901 = vmul.f32 %v423, %v1875
        %v1902 = vmul.f32 %v424, %v1875
        %v1903 = vmul.f32 %v425, %v1875
        %v1904 = vmul.f32 %v426, %v1875
        %v1905 = vmul.f32 %v427, %v1875
        %v1906 = vmul.f32 %v428, %v1875
        %v1907 = vmul.f32 %v429, %v1875
        %v1908 = vmul.f32 %v430, %v1875
        %v1909 = vmul.f32 %v431, %v1875
        %v1910 = vmul.f32 %v432, %v1875
        %v1911 = vmul.f32 %v433, %v1875
        %v1912 = vmul.f32 %v434, %v1875
        %v1913 = vmul.f32 %v435, %v1875
        %v1914 = vmul.f32 %v436, %v1875
        %v1915 = vmul.f32 %v437, %v1875
        %v1916 = vmul.f32 %v438, %v1875
        %v1917 = vmul.f32 %v439, %v1875
        %v1918 = vmul.f32 %v440, %v1875
        %v1919 = vmul.f32 %v441, %v1875
        %v1920 = vmul.f32 %v442, %v1875
        %v1921 = vmul.f32 %v443, %v1875
        %v1922 = vmul.f32 %v444, %v1875
        %v1923 = vmul.f32 %v445, %v1875
        %v1972 = vrot.slane %v1876, 2
        %v1973 = vrot.slane %v1877, 2
        %v1974 = vsel %vm1483, %v1972, %v1973
        %v1975 = vrot.slane %v1878, 2
        %v1976 = vsel %vm1483, %v1973, %v1975
        %v1977 = vrot.slane %v1879, 2
        %v1978 = vrot.slane %v1880, 2
        %v1979 = vsel %vm1483, %v1977, %v1978
        %v1980 = vrot.slane %v1881, 2
        %v1981 = vsel %vm1483, %v1978, %v1980
        %v1982 = vrot.slane %v1882, 2
        %v1983 = vrot.slane %v1883, 2
        %v1984 = vsel %vm1483, %v1982, %v1983
        %v1985 = vrot.slane %v1884, 2
        %v1986 = vsel %vm1483, %v1983, %v1985
        %v1987 = vrot.slane %v1885, 2
        %v1988 = vrot.slane %v1886, 2
        %v1989 = vsel %vm1483, %v1987, %v1988
        %v1990 = vrot.slane %v1887, 2
        %v1991 = vsel %vm1483, %v1988, %v1990
        %v1992 = vrot.slane %v1888, 2
        %v1993 = vrot.slane %v1889, 2
        %v1994 = vsel %vm1483, %v1992, %v1993
        %v1995 = vrot.slane %v1890, 2
        %v1996 = vsel %vm1483, %v1993, %v1995
        %v1997 = vrot.slane %v1891, 2
        %v1998 = vrot.slane %v1892, 2
        %v1999 = vsel %vm1483, %v1997, %v1998
        %v2000 = vrot.slane %v1893, 2
        %v2001 = vsel %vm1483, %v1998, %v2000
        %v2002 = vrot.slane %v1894, 2
        %v2003 = vrot.slane %v1895, 2
        %v2004 = vsel %vm1483, %v2002, %v2003
        %v2005 = vrot.slane %v1896, 2
        %v2006 = vsel %vm1483, %v2003, %v2005
        %v2007 = vrot.slane %v1897, 2
        %v2008 = vrot.slane %v1898, 2
        %v2009 = vsel %vm1483, %v2007, %v2008
        %v2010 = vrot.slane %v1899, 2
        %v2011 = vsel %vm1483, %v2008, %v2010
        %v2012 = vrot.slane %v1900, 2
        %v2013 = vrot.slane %v1901, 2
        %v2014 = vsel %vm1483, %v2012, %v2013
        %v2015 = vrot.slane %v1902, 2
        %v2016 = vsel %vm1483, %v2013, %v2015
        %v2017 = vrot.slane %v1903, 2
        %v2018 = vrot.slane %v1904, 2
        %v2019 = vsel %vm1483, %v2017, %v2018
        %v2020 = vrot.slane %v1905, 2
        %v2021 = vsel %vm1483, %v2018, %v2020
        %v2022 = vrot.slane %v1906, 2
        %v2023 = vrot.slane %v1907, 2
        %v2024 = vsel %vm1483, %v2022, %v2023
        %v2025 = vrot.slane %v1908, 2
        %v2026 = vsel %vm1483, %v2023, %v2025
        %v2027 = vrot.slane %v1909, 2
        %v2028 = vrot.slane %v1910, 2
        %v2029 = vsel %vm1483, %v2027, %v2028
        %v2030 = vrot.slane %v1911, 2
        %v2031 = vsel %vm1483, %v2028, %v2030
        %v2032 = vrot.slane %v1912, 2
        %v2033 = vrot.slane %v1913, 2
        %v2034 = vsel %vm1483, %v2032, %v2033
        %v2035 = vrot.slane %v1914, 2
        %v2036 = vsel %vm1483, %v2033, %v2035
        %v2037 = vrot.slane %v1915, 2
        %v2038 = vrot.slane %v1916, 2
        %v2039 = vsel %vm1483, %v2037, %v2038
        %v2040 = vrot.slane %v1917, 2
        %v2041 = vsel %vm1483, %v2038, %v2040
        %v2042 = vrot.slane %v1918, 2
        %v2043 = vrot.slane %v1919, 2
        %v2044 = vsel %vm1483, %v2042, %v2043
        %v2045 = vrot.slane %v1920, 2
        %v2046 = vsel %vm1483, %v2043, %v2045
        %v2047 = vrot.slane %v1921, 2
        %v2048 = vrot.slane %v1922, 2
        %v2049 = vsel %vm1483, %v2047, %v2048
        %v2050 = vrot.slane %v1923, 2
        %v2051 = vsel %vm1483, %v2048, %v2050
        %v2084 = vadd.f32 %v1840, %v1974
        %v2085 = vadd.f32 %v1841, %v1976
        %v2086 = vadd.f32 %v1842, %v1979
        %v2087 = vadd.f32 %v1843, %v1981
        %v2088 = vadd.f32 %v1844, %v1984
        %v2089 = vadd.f32 %v1845, %v1986
        %v2090 = vadd.f32 %v1846, %v1989
        %v2091 = vadd.f32 %v1847, %v1991
        %v2092 = vadd.f32 %v1848, %v1994
        %v2093 = vadd.f32 %v1849, %v1996
        %v2094 = vadd.f32 %v1850, %v1999
        %v2095 = vadd.f32 %v1851, %v2001
        %v2096 = vadd.f32 %v1852, %v2004
        %v2097 = vadd.f32 %v1853, %v2006
        %v2098 = vadd.f32 %v1854, %v2009
        %v2099 = vadd.f32 %v1855, %v2011
        %v2100 = vadd.f32 %v1856, %v2014
        %v2101 = vadd.f32 %v1857, %v2016
        %v2102 = vadd.f32 %v1858, %v2019
        %v2103 = vadd.f32 %v1859, %v2021
        %v2104 = vadd.f32 %v1860, %v2024
        %v2105 = vadd.f32 %v1861, %v2026
        %v2106 = vadd.f32 %v1862, %v2029
        %v2107 = vadd.f32 %v1863, %v2031
        %v2108 = vadd.f32 %v1864, %v2034
        %v2109 = vadd.f32 %v1865, %v2036
        %v2110 = vadd.f32 %v1866, %v2039
        %v2111 = vadd.f32 %v1867, %v2041
        %v2112 = vadd.f32 %v1868, %v2044
        %v2113 = vadd.f32 %v1869, %v2046
        %v2114 = vadd.f32 %v1870, %v2049
        %v2115 = vadd.f32 %v1871, %v2051
        %v2117 = vlaneseq
        %v2118 = vshrl.u32 %v2117, 7
        %v2119 = vsub.s32 0, %v2118
        %v2120 = vrot.slane %v389, %v2119
        %v2122 = vadd.f32 %v2084, %v2120
        %v2123 = vadd.f32 %v2085, %v2120
        %v2124 = vadd.f32 %v2086, %v2120
        %v2125 = vadd.f32 %v2087, %v2120
        %v2126 = vadd.f32 %v2088, %v2120
        %v2127 = vadd.f32 %v2089, %v2120
        %v2128 = vadd.f32 %v2090, %v2120
        %v2129 = vadd.f32 %v2091, %v2120
        %v2130 = vadd.f32 %v2092, %v2120
        %v2131 = vadd.f32 %v2093, %v2120
        %v2132 = vadd.f32 %v2094, %v2120
        %v2133 = vadd.f32 %v2095, %v2120
        %v2134 = vadd.f32 %v2096, %v2120
        %v2135 = vadd.f32 %v2097, %v2120
        %v2136 = vadd.f32 %v2098, %v2120
        %v2137 = vadd.f32 %v2099, %v2120
        %v2138 = vadd.f32 %v2100, %v2120
        %v2139 = vadd.f32 %v2101, %v2120
        %v2140 = vadd.f32 %v2102, %v2120
        %v2141 = vadd.f32 %v2103, %v2120
        %v2142 = vadd.f32 %v2104, %v2120
        %v2143 = vadd.f32 %v2105, %v2120
        %v2144 = vadd.f32 %v2106, %v2120
        %v2145 = vadd.f32 %v2107, %v2120
        %v2146 = vadd.f32 %v2108, %v2120
        %v2147 = vadd.f32 %v2109, %v2120
        %v2148 = vadd.f32 %v2110, %v2120
        %v2149 = vadd.f32 %v2111, %v2120
        %v2150 = vadd.f32 %v2112, %v2120
        %v2151 = vadd.f32 %v2113, %v2120
        %v2152 = vadd.f32 %v2114, %v2120
        %v2153 = vadd.f32 %v2115, %v2120
        %v2154 = vmax.f32 %v2122, 0.0
        %v2155 = vmax.f32 %v2123, 0.0
        %v2156 = vmax.f32 %v2124, 0.0
        %v2157 = vmax.f32 %v2125, 0.0
        %v2158 = vmax.f32 %v2126, 0.0
        %v2159 = vmax.f32 %v2127, 0.0
        %v2160 = vmax.f32 %v2128, 0.0
        %v2161 = vmax.f32 %v2129, 0.0
        %v2162 = vmax.f32 %v2130, 0.0
        %v2163 = vmax.f32 %v2131, 0.0
        %v2164 = vmax.f32 %v2132, 0.0
        %v2165 = vmax.f32 %v2133, 0.0
        %v2166 = vmax.f32 %v2134, 0.0
        %v2167 = vmax.f32 %v2135, 0.0
        %v2168 = vmax.f32 %v2136, 0.0
        %v2169 = vmax.f32 %v2137, 0.0
        %v2170 = vmax.f32 %v2138, 0.0
        %v2171 = vmax.f32 %v2139, 0.0
        %v2172 = vmax.f32 %v2140, 0.0
        %v2173 = vmax.f32 %v2141, 0.0
        %v2174 = vmax.f32 %v2142, 0.0
        %v2175 = vmax.f32 %v2143, 0.0
        %v2176 = vmax.f32 %v2144, 0.0
        %v2177 = vmax.f32 %v2145, 0.0
        %v2178 = vmax.f32 %v2146, 0.0
        %v2179 = vmax.f32 %v2147, 0.0
        %v2180 = vmax.f32 %v2148, 0.0
        %v2181 = vmax.f32 %v2149, 0.0
        %v2182 = vmax.f32 %v2150, 0.0
        %v2183 = vmax.f32 %v2151, 0.0
        %v2184 = vmax.f32 %v2152, 0.0
        %v2185 = vmax.f32 %v2153, 0.0
        %v2186 = vpack.c.bf16 %v2155, %v2154
        %v2187 = vpack.c.bf16 %v2157, %v2156
        %v2188 = vpack.c.bf16 %v2159, %v2158
        %v2189 = vpack.c.bf16 %v2161, %v2160
        %v2190 = vpack.c.bf16 %v2163, %v2162
        %v2191 = vpack.c.bf16 %v2165, %v2164
        %v2192 = vpack.c.bf16 %v2167, %v2166
        %v2193 = vpack.c.bf16 %v2169, %v2168
        %v2194 = vpack.c.bf16 %v2171, %v2170
        %v2195 = vpack.c.bf16 %v2173, %v2172
        %v2196 = vpack.c.bf16 %v2175, %v2174
        %v2197 = vpack.c.bf16 %v2177, %v2176
        %v2198 = vpack.c.bf16 %v2179, %v2178
        %v2199 = vpack.c.bf16 %v2181, %v2180
        %v2200 = vpack.c.bf16 %v2183, %v2182
        %v2201 = vpack.c.bf16 %v2185, %v2184
        %v2202 = vld [vmem:[%s3] sm:$0xf]
        %v2203 = vld [vmem:[%s3 + $0x4] sm:$0xf]
        %v2204 = vld [vmem:[%s3 + $0x8] sm:$0xf]
        %v2205 = vld [vmem:[%s3 + $0xc] sm:$0xf]
        %v2206 = vld [vmem:[%s4] sm:$0x1]
        %v2208 = vlaneseq
        %v2209 = vshrl.u32 %v2208, 7
        %v2210 = vsub.s32 0, %v2209
        %v2211 = vrot.slane %v2206, %v2210
        %v2217 = vunpack.c.l.b16 %v2202
        %v2218 = vunpack.c.l.b16 %v2203
        %v2219 = vunpack.c.l.b16 %v2204
        %v2220 = vunpack.c.l.b16 %v2205
        %v2221 = vpack.c.b16 %v2218, %v2217
        %v2222 = vpack.c.b16 %v2220, %v2219
        %vm2225 = vcmask 261120
        %v2227 = vsel %vm2225, %v2186, 0
        %v2230 = vsel %vm2225, %v2187, 0
        %v2233 = vsel %vm2225, %v2188, 0
        %v2236 = vsel %vm2225, %v2189, 0
        %v2239 = vsel %vm2225, %v2190, 0
        %v2242 = vsel %vm2225, %v2191, 0
        %v2245 = vsel %vm2225, %v2192, 0
        %v2248 = vsel %vm2225, %v2193, 0
        %v2251 = vsel %vm2225, %v2194, 0
        %v2254 = vsel %vm2225, %v2195, 0
        %v2257 = vsel %vm2225, %v2196, 0
        %v2260 = vsel %vm2225, %v2197, 0
        %v2263 = vsel %vm2225, %v2198, 0
        %v2266 = vsel %vm2225, %v2199, 0
        %v2269 = vsel %vm2225, %v2200, 0
        %v2272 = vsel %vm2225, %v2201, 0
        %2274 = vmatprep.subr.bf16.mxu0 0
        %2275 = vmatpush1.bf16.msra.mxu0 %v2221
        %2276 = vmatprep.subr.bf16.mxu0 0
        %2277 = vmatpush1.bf16.msra.mxu0 %v2222
        %2278 = vmatprep.subr.bf16.mxu0 0
        %2279 = vmatpush1.bf16.msra.mxu0 0
        %2280 = vmatprep.subr.bf16.mxu0 0
        %2281 = vmatpush1.bf16.msra.mxu0 0
        %2282 = vmatprep.subr.bf16.mxu0 0
        %2283 = vmatpush1.bf16.msra.mxu0 0
        %2284 = vmatprep.subr.bf16.mxu0 0
        %2285 = vmatpush1.bf16.msra.mxu0 0
        %2286 = vmatprep.subr.bf16.mxu0 0
        %2287 = vmatpush1.bf16.msra.mxu0 0
        %2288 = vmatprep.subr.bf16.mxu0 0
        %2289 = vmatpush1.bf16.msra.mxu0 0
        %2290 = vmatprep.subr.bf16.mxu0 0
        %2291 = vmatpush1.bf16.msra.mxu0 0
        %2292 = vmatprep.subr.bf16.mxu0 0
        %2293 = vmatpush1.bf16.msra.mxu0 0
        %2294 = vmatprep.subr.bf16.mxu0 0
        %2295 = vmatpush1.bf16.msra.mxu0 0
        %2296 = vmatprep.subr.bf16.mxu0 0
        %2297 = vmatpush1.bf16.msra.mxu0 0
        %2298 = vmatprep.subr.bf16.mxu0 0
        %2299 = vmatpush1.bf16.msra.mxu0 0
        %2300 = vmatprep.subr.bf16.mxu0 0
        %2301 = vmatpush1.bf16.msra.mxu0 0
        %2302 = vmatprep.subr.bf16.mxu0 0
        %2303 = vmatpush1.bf16.msra.mxu0 0
        %2304 = vmatprep.subr.bf16.mxu0 0
        %2305 = vmatpush1.bf16.msra.mxu0 0
        %2306 = vmatprep.mubr.bf16.mxu0 0
        %2307 = vmatmul.mubr.bf16.gmra.mrb[0].mxu0 %v2227
        %v2308 = vpop.f32.mrb[0].mxu0
        %v2309 = vadd.f32 %v2211, %v2308
        %v2310 = vpop.f32.mrb[0].mxu0
        %v2311 = vpop.f32.mrb[0].mxu0
        %v2312 = vadd.f32 %v2211, %v2311
        %v2313 = vpop.f32.mrb[0].mxu0
        %2314 = vmatprep.mubr.bf16.mxu0 0
        %2315 = vmatmul.mubr.bf16.gmra.mrb[0].mxu0 %v2230
        %v2316 = vpop.f32.mrb[0].mxu0
        %v2317 = vadd.f32 %v2211, %v2316
        %v2318 = vpop.f32.mrb[0].mxu0
        %v2319 = vpop.f32.mrb[0].mxu0
        %v2320 = vadd.f32 %v2211, %v2319
        %v2321 = vpop.f32.mrb[0].mxu0
        %2322 = vmatprep.mubr.bf16.mxu0 0
        %2323 = vmatmul.mubr.bf16.gmra.mrb[0].mxu0 %v2233
        %v2324 = vpop.f32.mrb[0].mxu0
        %v2325 = vadd.f32 %v2211, %v2324
        %v2326 = vpop.f32.mrb[0].mxu0
        %v2327 = vpop.f32.mrb[0].mxu0
        %v2328 = vadd.f32 %v2211, %v2327
        %v2329 = vpop.f32.mrb[0].mxu0
        %2330 = vmatprep.mubr.bf16.mxu0 0
        %2331 = vmatmul.mubr.bf16.gmra.mrb[0].mxu0 %v2236
        %v2332 = vpop.f32.mrb[0].mxu0
        %v2333 = vadd.f32 %v2211, %v2332
        %v2334 = vpop.f32.mrb[0].mxu0
        %v2335 = vpop.f32.mrb[0].mxu0
        %v2336 = vadd.f32 %v2211, %v2335
        %v2337 = vpop.f32.mrb[0].mxu0
        %2338 = vmatprep.mubr.bf16.mxu0 0
        %2339 = vmatmul.mubr.bf16.gmra.mrb[0].mxu0 %v2239
        %v2340 = vpop.f32.mrb[0].mxu0
        %v2341 = vadd.f32 %v2211, %v2340
        %v2342 = vpop.f32.mrb[0].mxu0
        %v2343 = vpop.f32.mrb[0].mxu0
        %v2344 = vadd.f32 %v2211, %v2343
        %v2345 = vpop.f32.mrb[0].mxu0
        %2346 = vmatprep.mubr.bf16.mxu0 0
        %2347 = vmatmul.mubr.bf16.gmra.mrb[0].mxu0 %v2242
        %v2348 = vpop.f32.mrb[0].mxu0
        %v2349 = vadd.f32 %v2211, %v2348
        %v2350 = vpop.f32.mrb[0].mxu0
        %v2351 = vpop.f32.mrb[0].mxu0
        %v2352 = vadd.f32 %v2211, %v2351
        %v2353 = vpop.f32.mrb[0].mxu0
        %2354 = vmatprep.mubr.bf16.mxu0 0
        %2355 = vmatmul.mubr.bf16.gmra.mrb[0].mxu0 %v2245
        %v2356 = vpop.f32.mrb[0].mxu0
        %v2357 = vadd.f32 %v2211, %v2356
        %v2358 = vpop.f32.mrb[0].mxu0
        %v2359 = vpop.f32.mrb[0].mxu0
        %v2360 = vadd.f32 %v2211, %v2359
        %v2361 = vpop.f32.mrb[0].mxu0
        %2362 = vmatprep.mubr.bf16.mxu0 0
        %2363 = vmatmul.mubr.bf16.gmra.mrb[0].mxu0 %v2248
        %v2364 = vpop.f32.mrb[0].mxu0
        %v2365 = vadd.f32 %v2211, %v2364
        %v2366 = vpop.f32.mrb[0].mxu0
        %v2367 = vpop.f32.mrb[0].mxu0
        %v2368 = vadd.f32 %v2211, %v2367
        %v2369 = vpop.f32.mrb[0].mxu0
        %2370 = vmatprep.mubr.bf16.mxu0 0
        %2371 = vmatmul.mubr.bf16.gmra.mrb[0].mxu0 %v2251
        %v2372 = vpop.f32.mrb[0].mxu0
        %v2373 = vadd.f32 %v2211, %v2372
        %v2374 = vpop.f32.mrb[0].mxu0
        %v2375 = vpop.f32.mrb[0].mxu0
        %v2376 = vadd.f32 %v2211, %v2375
        %v2377 = vpop.f32.mrb[0].mxu0
        %2378 = vmatprep.mubr.bf16.mxu0 0
        %2379 = vmatmul.mubr.bf16.gmra.mrb[0].mxu0 %v2254
        %v2380 = vpop.f32.mrb[0].mxu0
        %v2381 = vadd.f32 %v2211, %v2380
        %v2382 = vpop.f32.mrb[0].mxu0
        %v2383 = vpop.f32.mrb[0].mxu0
        %v2384 = vadd.f32 %v2211, %v2383
        %v2385 = vpop.f32.mrb[0].mxu0
        %2386 = vmatprep.mubr.bf16.mxu0 0
        %2387 = vmatmul.mubr.bf16.gmra.mrb[0].mxu0 %v2257
        %v2388 = vpop.f32.mrb[0].mxu0
        %v2389 = vadd.f32 %v2211, %v2388
        %v2390 = vpop.f32.mrb[0].mxu0
        %v2391 = vpop.f32.mrb[0].mxu0
        %v2392 = vadd.f32 %v2211, %v2391
        %v2393 = vpop.f32.mrb[0].mxu0
        %2394 = vmatprep.mubr.bf16.mxu0 0
        %2395 = vmatmul.mubr.bf16.gmra.mrb[0].mxu0 %v2260
        %v2396 = vpop.f32.mrb[0].mxu0
        %v2397 = vadd.f32 %v2211, %v2396
        %v2398 = vpop.f32.mrb[0].mxu0
        %v2399 = vpop.f32.mrb[0].mxu0
        %v2400 = vadd.f32 %v2211, %v2399
        %v2401 = vpop.f32.mrb[0].mxu0
        %2402 = vmatprep.mubr.bf16.mxu0 0
        %2403 = vmatmul.mubr.bf16.gmra.mrb[0].mxu0 %v2263
        %v2404 = vpop.f32.mrb[0].mxu0
        %v2405 = vadd.f32 %v2211, %v2404
        %v2406 = vpop.f32.mrb[0].mxu0
        %v2407 = vpop.f32.mrb[0].mxu0
        %v2408 = vadd.f32 %v2211, %v2407
        %v2409 = vpop.f32.mrb[0].mxu0
        %2410 = vmatprep.mubr.bf16.mxu0 0
        %2411 = vmatmul.mubr.bf16.gmra.mrb[0].mxu0 %v2266
        %v2412 = vpop.f32.mrb[0].mxu0
        %v2413 = vadd.f32 %v2211, %v2412
        %v2414 = vpop.f32.mrb[0].mxu0
        %v2415 = vpop.f32.mrb[0].mxu0
        %v2416 = vadd.f32 %v2211, %v2415
        %v2417 = vpop.f32.mrb[0].mxu0
        %2418 = vmatprep.mubr.bf16.mxu0 0
        %2419 = vmatmul.mubr.bf16.gmra.mrb[0].mxu0 %v2269
        %v2420 = vpop.f32.mrb[0].mxu0
        %v2421 = vadd.f32 %v2211, %v2420
        %v2422 = vpop.f32.mrb[0].mxu0
        %v2423 = vpop.f32.mrb[0].mxu0
        %v2424 = vadd.f32 %v2211, %v2423
        %v2425 = vpop.f32.mrb[0].mxu0
        %2426 = vmatprep.mubr.bf16.mxu0 0
        %2427 = vmatmul.mubr.bf16.gmra.mrb[0].mxu0 %v2272
        %v2428 = vpop.f32.mrb[0].mxu0
        %v2429 = vadd.f32 %v2211, %v2428
        %v2430 = vpop.f32.mrb[0].mxu0
        %v2431 = vpop.f32.mrb[0].mxu0
        %v2432 = vadd.f32 %v2211, %v2431
        %v2433 = vpop.f32.mrb[0].mxu0
        %2434 = vdwg.mxu0
        %v2435 = vmax.f32 %v2309, 0.0
        %v2436 = vmax.f32 %v2312, 0.0
        %v2437 = vmax.f32 %v2317, 0.0
        %v2438 = vmax.f32 %v2320, 0.0
        %v2439 = vmax.f32 %v2325, 0.0
        %v2440 = vmax.f32 %v2328, 0.0
        %v2441 = vmax.f32 %v2333, 0.0
        %v2442 = vmax.f32 %v2336, 0.0
        %v2443 = vmax.f32 %v2341, 0.0
        %v2444 = vmax.f32 %v2344, 0.0
        %v2445 = vmax.f32 %v2349, 0.0
        %v2446 = vmax.f32 %v2352, 0.0
        %v2447 = vmax.f32 %v2357, 0.0
        %v2448 = vmax.f32 %v2360, 0.0
        %v2449 = vmax.f32 %v2365, 0.0
        %v2450 = vmax.f32 %v2368, 0.0
        %v2451 = vmax.f32 %v2373, 0.0
        %v2452 = vmax.f32 %v2376, 0.0
        %v2453 = vmax.f32 %v2381, 0.0
        %v2454 = vmax.f32 %v2384, 0.0
        %v2455 = vmax.f32 %v2389, 0.0
        %v2456 = vmax.f32 %v2392, 0.0
        %v2457 = vmax.f32 %v2397, 0.0
        %v2458 = vmax.f32 %v2400, 0.0
        %v2459 = vmax.f32 %v2405, 0.0
        %v2460 = vmax.f32 %v2408, 0.0
        %v2461 = vmax.f32 %v2413, 0.0
        %v2462 = vmax.f32 %v2416, 0.0
        %v2463 = vmax.f32 %v2421, 0.0
        %v2464 = vmax.f32 %v2424, 0.0
        %v2465 = vmax.f32 %v2429, 0.0
        %v2466 = vmax.f32 %v2432, 0.0
        %vm2467 = vcmask 523264
        %2468 = vst.msk [vmem:[%s256] sm:$0xff] %vm2467, %v2435
        %2469 = vst.msk [vmem:[%s256 + $0x8] sm:$0xff] %vm2467, %v2436
        %2470 = vst.msk [vmem:[%s256 + $0x10] sm:$0xff] %vm2467, %v2437
        %2471 = vst.msk [vmem:[%s256 + $0x18] sm:$0xff] %vm2467, %v2438
        %2472 = vst.msk [vmem:[%s256 + $0x20] sm:$0xff] %vm2467, %v2439
        %2473 = vst.msk [vmem:[%s256 + $0x28] sm:$0xff] %vm2467, %v2440
        %2474 = vst.msk [vmem:[%s256 + $0x30] sm:$0xff] %vm2467, %v2441
        %2475 = vst.msk [vmem:[%s256 + $0x38] sm:$0xff] %vm2467, %v2442
        %2476 = vst.msk [vmem:[%s256 + $0x40] sm:$0xff] %vm2467, %v2443
        %2477 = vst.msk [vmem:[%s256 + $0x48] sm:$0xff] %vm2467, %v2444
        %2478 = vst.msk [vmem:[%s256 + $0x50] sm:$0xff] %vm2467, %v2445
        %2479 = vst.msk [vmem:[%s256 + $0x58] sm:$0xff] %vm2467, %v2446
        %2480 = vst.msk [vmem:[%s256 + $0x60] sm:$0xff] %vm2467, %v2447
        %2481 = vst.msk [vmem:[%s256 + $0x68] sm:$0xff] %vm2467, %v2448
        %2482 = vst.msk [vmem:[%s256 + $0x70] sm:$0xff] %vm2467, %v2449
        %2483 = vst.msk [vmem:[%s256 + $0x78] sm:$0xff] %vm2467, %v2450
        %2484 = vst.msk [vmem:[%s256 + $0x80] sm:$0xff] %vm2467, %v2451
        %2485 = vst.msk [vmem:[%s256 + $0x88] sm:$0xff] %vm2467, %v2452
        %2486 = vst.msk [vmem:[%s256 + $0x90] sm:$0xff] %vm2467, %v2453
        %2487 = vst.msk [vmem:[%s256 + $0x98] sm:$0xff] %vm2467, %v2454
        %2488 = vst.msk [vmem:[%s256 + $0xa0] sm:$0xff] %vm2467, %v2455
        %2489 = vst.msk [vmem:[%s256 + $0xa8] sm:$0xff] %vm2467, %v2456
        %2490 = vst.msk [vmem:[%s256 + $0xb0] sm:$0xff] %vm2467, %v2457
        %2491 = vst.msk [vmem:[%s256 + $0xb8] sm:$0xff] %vm2467, %v2458
        %2492 = vst.msk [vmem:[%s256 + $0xc0] sm:$0xff] %vm2467, %v2459
        %2493 = vst.msk [vmem:[%s256 + $0xc8] sm:$0xff] %vm2467, %v2460
        %2494 = vst.msk [vmem:[%s256 + $0xd0] sm:$0xff] %vm2467, %v2461
        %2495 = vst.msk [vmem:[%s256 + $0xd8] sm:$0xff] %vm2467, %v2462
        %2496 = vst.msk [vmem:[%s256 + $0xe0] sm:$0xff] %vm2467, %v2463
        %2497 = vst.msk [vmem:[%s256 + $0xe8] sm:$0xff] %vm2467, %v2464
        %2498 = vst.msk [vmem:[%s256 + $0xf0] sm:$0xff] %vm2467, %v2465
        %2499 = vst.msk [vmem:[%s256 + $0xf8] sm:$0xff] %vm2467, %v2466
        %s2500 = sand.u32 %s154, 1
        %s2501 = scalar_lea.sflag [#allocation5], %s2500
        %s2502 = sand.u32 %s154, 1
        %s2503 = smul.addr %s2502, 256
        %s2504 = scalar_lea.vmem [#allocation6], %s2503
        // Predicated region
        $region49: #{block_forward.1} parent=39 // pred_check
          %p2505 = pneg %p164
        $region50: #{block_forward.1} parent=39 // pred_check_branch
          %2507 = sbr.rel (%p2505) target = $region52
        $region51: #{block_forward.1} parent=39 // pred_region
          %s2508 = sadd.s32 %s26, %s27
          %s2509 = smul.u32 32, %s2508
          %s2511 = ssub.s32 4096, 4096
          %2512 = vsyncadd %s2501, %s2511
          %s2513 = smul.addr %s2509, 128
          %s2514 = scalar_lea.hbm %s5, %s2513
          %s2515 = sshll.u32 %s2504, 4
          %s2516 = int_to_ptr.vmem [resolvable:$true] %s2515
          %2521 = dma.vmem_to_hbm [thread:$0]  %s2516, 4096, %s2514, %s2501, 128, 128, 8
        $region52: #{block_forward.1} parent=39 // pred_fallthru
          _
      $region40: #{block_forward.1} parent=5 // pred_fallthru
        _
      %p2522 = scmp.le.s32.totalorder 2, %s17
      // Predicated region
      $region53: #{block_forward.1} parent=5 // pred_check
        %p2523 = pneg %p2522
      $region54: #{block_forward.1} parent=5 // pred_check_branch
        %2525 = sbr.rel (%p2523) target = $region56
      $region55: #{block_forward.1} parent=5 // pred_region
        %s2526 = ssub.s32 %s17, 2
        // Predicated region
        $region57: #{block_forward.1} parent=55 // pred_check
          %p2527 = pneg %p170
        $region58: #{block_forward.1} parent=55 // pred_check_branch
          %2529 = sbr.rel (%p2527) target = $region60
        $region59: #{block_forward.1} parent=55 // pred_region
          %s2530 = sand.u32 %s155, 1
          %s2531 = scalar_lea.sflag [#allocation5], %s2530
          %s2532 = sand.u32 %s155, 1
          %s2533 = smul.addr %s2532, 256
          %s2534 = scalar_lea.vmem [#allocation6], %s2533
          %2535 = dma.done %s2531, 4096
        $region60: #{block_forward.1} parent=55 // pred_fallthru
          _
      $region56: #{block_forward.1} parent=5 // pred_fallthru
        _
    $region6: #{block_forward.1} parent=1 // loop_footer
      %s21 = sadd.s32 1, %s17
    $region7: #{block_forward.1} parent=1 // loop_footer_branch
      %16 = sbr.rel target = $region3
    $region8: #{block_forward.1} parent=1 // loop_exit
      _
    %2536 = vsyncpa [#allocation4], 1
    %s2537 = scalar_lea.sflag [#allocation4], 1
    %2538 = vsyncpa %s2537, 1
    %2539 = vsyncpa [#allocation5], 1
    %s2540 = scalar_lea.sflag [#allocation5], 1
    %2541 = vsyncpa %s2540, 1

</llo_original>
